<compile_context>
chip_gen: v7x
topology: tpu7x:2x2x1
jax: 0.10.0
libtpu: 0.0.40
codegen_flags: <defaults>
</compile_context>

<pallas_src>
import functools

import jax
import jax.numpy as jnp
from jax import lax
from jax.experimental import pallas as pl
from jax.experimental.pallas import tpu as pltpu


# ----------------------------------------------------------------------------
# Fused kernel
# ----------------------------------------------------------------------------
def _conv_block_kernel(x_ref, w_ref, b_ref, wds_ref, bds_ref, o_ref, xpad_ref, *,
                       ksize, dilations, maxpad, seq_len, out_len, stride, mxu_dtype):
    """Fused ConvBlock for one batch element; internal layout is (length, channel).

    x_ref    : (1, L, C)            input activation (f32)
    w_ref    : (NL*K, C_in, C_out)  stacked dilated-conv weights (mxu_dtype)
    b_ref    : (NL, 1, C)           biases (f32)
    wds_ref  : (K, C_in, C_out)     downsample weights (mxu_dtype)
    bds_ref  : (1, C)               downsample bias (f32)
    o_ref    : (1, out_len, C)      output (f32)
    xpad_ref : (L + 2*maxpad, C)    VMEM scratch: zero-padded resident activation
    """
    L = seq_len
    C = x_ref.shape[2]

    # In-kernel zero padding: halo rows stay zero; center holds the live activation.
    xpad_ref[...] = jnp.zeros_like(xpad_ref)
    cur = x_ref[0]                                           # (L, C) f32
    xpad_ref[maxpad:maxpad + L, :] = cur

    # Residual dilated conv stack -- activation never leaves VMEM.
    for li, d in enumerate(dilations):
        lp = ((ksize - 1) * d) // 2
        acc = jnp.zeros((L, C), jnp.float32)
        for k in range(ksize):                               # static unrolled taps
            off = maxpad - lp + k * d
            tap = xpad_ref[off:off + L, :].astype(mxu_dtype)         # (L, C_in)
            acc = acc + jnp.dot(tap, w_ref[li * ksize + k],
                                preferred_element_type=jnp.float32)
        y = acc + b_ref[li]                                  # (1, C) bias broadcast (f32)
        y = y * jax.nn.sigmoid(y)                            # SiLU in f32
        cur = y + cur                                        # residual add in f32
        xpad_ref[maxpad:maxpad + L, :] = cur                 # publish for next layer's taps

    # Strided downsample conv: read only the out_len needed rows per tap
    # (strided sublane slices of the scratch; no selection-matrix matmul).
    dspad = ksize // 2
    acc = jnp.zeros((out_len, C), jnp.float32)
    for k in range(ksize):
        off = maxpad - dspad + k
        stop = off + (out_len - 1) * stride + 1
        tap = xpad_ref[off:stop:stride, :].astype(mxu_dtype)         # (out_len, C_in)
        acc = acc + jnp.dot(tap, wds_ref[k], preferred_element_type=jnp.float32)
    o_ref[0] = (acc + bds_ref[...]).astype(o_ref.dtype)


# ----------------------------------------------------------------------------
# Wrapper (weight layout + single fused pallas_call)
# ----------------------------------------------------------------------------
def conv_block_forward(x, layer_params, dilations, ds_params, stride, ksize,
                       mxu_dtype=jnp.float32):
    """x: (B, C, L) f32.  layer_params: [(w (C,C,K), b (C,))]*NL.  Returns (B, C, L_out)."""
    B, C, L = x.shape
    nl = len(layer_params)

    # Weight layout: (C_out, C_in, K) -> per-tap (C_in, C_out); layers*taps stacked flat.
    w_stack = jnp.concatenate(
        [jnp.transpose(w, (2, 1, 0)) for w, _ in layer_params], axis=0
    ).astype(mxu_dtype)                                      # (NL*K, C_in, C_out)
    b_stack = jnp.stack([b for _, b in layer_params]).reshape(nl, 1, C).astype(jnp.float32)
    w_ds, b_ds = ds_params
    wds = jnp.transpose(w_ds, (2, 1, 0)).astype(mxu_dtype)   # (K, C_in, C_out)
    bds = b_ds.reshape(1, C).astype(jnp.float32)

    dspad = ksize // 2
    total_pads = [(ksize - 1) * d for d in dilations]
    maxpad = max([p // 2 for p in total_pads] +
                 [p - p // 2 for p in total_pads] + [dspad])
    Lpad = L + 2 * maxpad
    out_len = (L + 2 * dspad - ksize) // stride + 1

    # Layout plumbing only: kernel works in (length, channel) layout.
    x_nlc = jnp.transpose(x, (0, 2, 1))                      # (B, L, C)

    kernel = functools.partial(
        _conv_block_kernel, ksize=ksize, dilations=tuple(dilations), maxpad=maxpad,
        seq_len=L, out_len=out_len, stride=stride, mxu_dtype=mxu_dtype)

    # TODO(synk): for production-scale L, add an L-tile grid axis with halo'd BlockSpecs
    # (halo = cumulative receptive field of the fused stack) so blocks/scratch fit v7x's
    # smaller VMEM and the pipeline has tiles to double-buffer.
    out_nlc = pl.pallas_call(
        kernel,
        out_shape=jax.ShapeDtypeStruct((B, out_len, C), x.dtype),
        grid=(B,),
        in_specs=[
            pl.BlockSpec((1, L, C), lambda b: (b, 0, 0)),
            pl.BlockSpec((nl * ksize, C, C), lambda b: (0, 0, 0)),
            pl.BlockSpec((nl, 1, C), lambda b: (0, 0, 0)),
            pl.BlockSpec((ksize, C, C), lambda b: (0, 0, 0)),
            pl.BlockSpec((1, C), lambda b: (0, 0)),
        ],
        out_specs=pl.BlockSpec((1, out_len, C), lambda b: (b, 0, 0)),
        scratch_shapes=[pltpu.VMEM((Lpad, C), jnp.float32)],
        compiler_params=pltpu.CompilerParams(dimension_semantics=("parallel",)),
    )(x_nlc, w_stack, b_stack, wds, bds)

    return jnp.transpose(out_nlc, (0, 2, 1))                 # back to (B, C, L_out)


# ----------------------------------------------------------------------------
# Parameter init (mirrors weight_norm parametrization)
# ----------------------------------------------------------------------------
def weight_norm_weight(v, g):
    norm = jnp.sqrt(jnp.sum(v * v, axis=(1, 2), keepdims=True))
    return g * v / norm


# ----------------------------------------------------------------------------
# Pure-JAX reference (correctness check)
# ----------------------------------------------------------------------------
def reference_forward(x, layer_params, dilations, ds_params, stride, ksize):
    dn = lax.conv_dimension_numbers(x.shape, layer_params[0][0].shape,
                                    ('NCH', 'OIH', 'NCH'))
    for (w, b), d in zip(layer_params, dilations):
        total_pad = (ksize - 1) * d
        lp = total_pad // 2
        rp = total_pad - lp
        y = lax.conv_general_dilated(x, w, window_strides=(1,),
                                     padding=[(lp, rp)], rhs_dilation=(d,),
                                     dimension_numbers=dn)
        y = y + b[None, :, None]
        y = y * jax.nn.sigmoid(y)                            # SiLU
        x = y + x                                            # residual
    w_ds, b_ds = ds_params
    p = ksize // 2
    y = lax.conv_general_dilated(x, w_ds, window_strides=(stride,),
                                 padding=[(p, p)], dimension_numbers=dn)
    return y + b_ds[None, :, None]


# ----------------------------------------------------------------------------
# Main
# ----------------------------------------------------------------------------
if __name__ == "__main__":
    B, C, L = 2, 4, 16
    K = 3
    NUM_LAYERS = 3
    DIL_GROWTH = 2
    STRIDE = 2

    key = jax.random.PRNGKey(0)
    keys = jax.random.split(key, 1 + 3 * (NUM_LAYERS + 1))
    x = jax.random.normal(keys[0], (B, C, L), jnp.float32)

    layer_params = []
    dilations = []
    d = 1
    for i in range(NUM_LAYERS):
        kv, kg, kb = keys[1 + 3 * i], keys[2 + 3 * i], keys[3 + 3 * i]
        v = jax.random.normal(kv, (C, C, K), jnp.float32) * 0.3
        g = jnp.abs(jax.random.normal(kg, (C, 1, 1), jnp.float32)) + 0.5
        w = weight_norm_weight(v, g)
        b = jax.random.normal(kb, (C,), jnp.float32) * 0.1
        layer_params.append((w, b))
        dilations.append(d)
        d *= DIL_GROWTH

    kv, kg, kb = keys[-3], keys[-2], keys[-1]
    v_ds = jax.random.normal(kv, (C, C, K), jnp.float32) * 0.3
    g_ds = jnp.abs(jax.random.normal(kg, (C, 1, 1), jnp.float32)) + 0.5
    w_ds = weight_norm_weight(v_ds, g_ds)
    b_ds = jax.random.normal(kb, (C,), jnp.float32) * 0.1
    ds_params = (w_ds, b_ds)

    ref = reference_forward(x, layer_params, dilations, ds_params, STRIDE, K)
    ref = jax.block_until_ready(ref)

    # f32 MXU operands: tight check against the f32 reference.
    out = conv_block_forward(x, layer_params, dilations, ds_params, STRIDE, K,
                             mxu_dtype=jnp.float32)
    out = jax.block_until_ready(out)
    assert out.shape == ref.shape, (out.shape, ref.shape)
    assert jnp.allclose(out, ref, atol=5e-4, rtol=5e-4), \
        f"f32 max abs err = {jnp.max(jnp.abs(out - ref))}"

    # bf16 MXU operands (f32 accumulation / epilogue): looser check.
    out_bf16 = conv_block_forward(x, layer_params, dilations, ds_params, STRIDE, K,
                                  mxu_dtype=jnp.bfloat16)
    out_bf16 = jax.block_until_ready(out_bf16)
    assert jnp.allclose(out_bf16, ref, atol=2e-1, rtol=5e-2), \
        f"bf16 max abs err = {jnp.max(jnp.abs(out_bf16 - ref))}"

    print("KERNEL_OK")
</pallas_src>

<mosaic_0001>
module attributes {stable_mosaic.version = 11 : i64} {
  func.func @_conv_block_kernel(%arg0: i32, %arg1: memref<1x16x4xf32, #tpu.memory_space<vmem>>, %arg2: memref<9x4x4xf32, #tpu.memory_space<vmem>>, %arg3: memref<3x1x4xf32, #tpu.memory_space<vmem>>, %arg4: memref<3x4x4xf32, #tpu.memory_space<vmem>>, %arg5: memref<1x4xf32, #tpu.memory_space<vmem>>, %arg6: memref<1x8x4xf32, #tpu.memory_space<vmem>>, %arg7: memref<24x4xf32, #tpu.memory_space<vmem>>) attributes {dimension_semantics = [#tpu.dimension_semantics<parallel>], iteration_bounds = array<i64: 2>, scalar_prefetch = 0 : i64, scratch_operands = 1 : i64, tpu.core_type = #tpu.core_type<tc>, window_params = [{transform_indices = @transform_0, window_bounds = array<i64: 1, 16, 4>}, {pipeline_mode = #tpu.pipeline_mode<synchronous>, transform_indices = @transform_1, window_bounds = array<i64: 9, 4, 4>}, {pipeline_mode = #tpu.pipeline_mode<synchronous>, transform_indices = @transform_2, window_bounds = array<i64: 3, 1, 4>}, {pipeline_mode = #tpu.pipeline_mode<synchronous>, transform_indices = @transform_3, window_bounds = array<i64: 3, 4, 4>}, {pipeline_mode = #tpu.pipeline_mode<synchronous>, transform_indices = @transform_4, window_bounds = array<i64: 1, 4>}, {transform_indices = @transform_5, window_bounds = array<i64: 1, 8, 4>}]} {
    %cst = arith.constant 0.000000e+00 : f32
    %0 = vector.broadcast %cst : f32 to vector<24x4xf32>
    %c0 = arith.constant 0 : index
    %c0_0 = arith.constant 0 : index
    %1 = vector.load %arg7[%c0, %c0_0] : memref<24x4xf32, #tpu.memory_space<vmem>>, vector<24x4xf32>
    tpu.vector_store %arg7[%c0, %c0_0], %0 {strides = array<i32>} : memref<24x4xf32, #tpu.memory_space<vmem>>, vector<24x4xf32>,
    %c0_1 = arith.constant 0 : index
    %c0_2 = arith.constant 0 : index
    %c0_3 = arith.constant 0 : index
    %2 = vector.load %arg1[%c0_1, %c0_2, %c0_3] : memref<1x16x4xf32, #tpu.memory_space<vmem>>, vector<1x16x4xf32>
    %3 = vector.shape_cast %2 : vector<1x16x4xf32> to vector<16x4xf32>
    %c4 = arith.constant 4 : index
    %c0_4 = arith.constant 0 : index
    %4 = vector.load %arg7[%c4, %c0_4] : memref<24x4xf32, #tpu.memory_space<vmem>>, vector<16x4xf32>
    tpu.vector_store %arg7[%c4, %c0_4], %3 {strides = array<i32>} : memref<24x4xf32, #tpu.memory_space<vmem>>, vector<16x4xf32>,
    %cst_5 = arith.constant 0.000000e+00 : f32
    %5 = vector.broadcast %cst_5 : f32 to vector<16x4xf32>
    %c3 = arith.constant 3 : index
    %c0_6 = arith.constant 0 : index
    %6 = vector.load %arg7[%c3, %c0_6] : memref<24x4xf32, #tpu.memory_space<vmem>>, vector<16x4xf32>
    %c0_7 = arith.constant 0 : index
    %c0_8 = arith.constant 0 : index
    %c0_9 = arith.constant 0 : index
    %7 = vector.load %arg2[%c0_7, %c0_8, %c0_9] : memref<9x4x4xf32, #tpu.memory_space<vmem>>, vector<1x4x4xf32>
    %8 = vector.shape_cast %7 : vector<1x4x4xf32> to vector<4x4xf32>
    %cst_10 = arith.constant dense<0.000000e+00> : vector<16x4xf32>
    %9 = tpu.matmul %6, %8, %cst_10 {dimension_numbers = #tpu.dot_dimension_numbers<[1], [0], [0], [1], [0, 0, 1, 1], [], []>} : vector<16x4xf32>, vector<4x4xf32>, vector<16x4xf32> -> vector<16x4xf32>
    %10 = arith.addf %5, %9 : vector<16x4xf32>
    %c4_11 = arith.constant 4 : index
    %c0_12 = arith.constant 0 : index
    %11 = vector.load %arg7[%c4_11, %c0_12] : memref<24x4xf32, #tpu.memory_space<vmem>>, vector<16x4xf32>
    %c1 = arith.constant 1 : index
    %c0_13 = arith.constant 0 : index
    %c0_14 = arith.constant 0 : index
    %12 = vector.load %arg2[%c1, %c0_13, %c0_14] : memref<9x4x4xf32, #tpu.memory_space<vmem>>, vector<1x4x4xf32>
    %13 = vector.shape_cast %12 : vector<1x4x4xf32> to vector<4x4xf32>
    %cst_15 = arith.constant dense<0.000000e+00> : vector<16x4xf32>
    %14 = tpu.matmul %11, %13, %cst_15 {dimension_numbers = #tpu.dot_dimension_numbers<[1], [0], [0], [1], [0, 0, 1, 1], [], []>} : vector<16x4xf32>, vector<4x4xf32>, vector<16x4xf32> -> vector<16x4xf32>
    %15 = arith.addf %10, %14 : vector<16x4xf32>
    %c5 = arith.constant 5 : index
    %c0_16 = arith.constant 0 : index
    %16 = vector.load %arg7[%c5, %c0_16] : memref<24x4xf32, #tpu.memory_space<vmem>>, vector<16x4xf32>
    %c2 = arith.constant 2 : index
    %c0_17 = arith.constant 0 : index
    %c0_18 = arith.constant 0 : index
    %17 = vector.load %arg2[%c2, %c0_17, %c0_18] : memref<9x4x4xf32, #tpu.memory_space<vmem>>, vector<1x4x4xf32>
    %18 = vector.shape_cast %17 : vector<1x4x4xf32> to vector<4x4xf32>
    %cst_19 = arith.constant dense<0.000000e+00> : vector<16x4xf32>
    %19 = tpu.matmul %16, %18, %cst_19 {dimension_numbers = #tpu.dot_dimension_numbers<[1], [0], [0], [1], [0, 0, 1, 1], [], []>} : vector<16x4xf32>, vector<4x4xf32>, vector<16x4xf32> -> vector<16x4xf32>
    %20 = arith.addf %15, %19 : vector<16x4xf32>
    %c0_20 = arith.constant 0 : index
    %c0_21 = arith.constant 0 : index
    %c0_22 = arith.constant 0 : index
    %21 = vector.load %arg3[%c0_20, %c0_21, %c0_22] : memref<3x1x4xf32, #tpu.memory_space<vmem>>, vector<1x1x4xf32>
    %22 = vector.shape_cast %21 : vector<1x1x4xf32> to vector<1x4xf32>
    %23 = vector.broadcast %22 : vector<1x4xf32> to vector<16x4xf32>
    %24 = arith.addf %20, %23 : vector<16x4xf32>
    %25 = arith.negf %24 : vector<16x4xf32>
    %26 = math.exp %25 : vector<16x4xf32>
    %cst_23 = arith.constant 1.000000e+00 : f32
    %27 = vector.broadcast %cst_23 : f32 to vector<16x4xf32>
    %28 = arith.addf %27, %26 : vector<16x4xf32>
    %29 = arith.divf %27, %28 : vector<16x4xf32>
    %30 = arith.mulf %24, %29 : vector<16x4xf32>
    %31 = arith.addf %30, %3 : vector<16x4xf32>
    %c4_24 = arith.constant 4 : index
    %c0_25 = arith.constant 0 : index
    %32 = vector.load %arg7[%c4_24, %c0_25] : memref<24x4xf32, #tpu.memory_space<vmem>>, vector<16x4xf32>
    tpu.vector_store %arg7[%c4_24, %c0_25], %31 {strides = array<i32>} : memref<24x4xf32, #tpu.memory_space<vmem>>, vector<16x4xf32>,
    %cst_26 = arith.constant 0.000000e+00 : f32
    %33 = vector.broadcast %cst_26 : f32 to vector<16x4xf32>
    %c2_27 = arith.constant 2 : index
    %c0_28 = arith.constant 0 : index
    %34 = vector.load %arg7[%c2_27, %c0_28] : memref<24x4xf32, #tpu.memory_space<vmem>>, vector<16x4xf32>
    %c3_29 = arith.constant 3 : index
    %c0_30 = arith.constant 0 : index
    %c0_31 = arith.constant 0 : index
    %35 = vector.load %arg2[%c3_29, %c0_30, %c0_31] : memref<9x4x4xf32, #tpu.memory_space<vmem>>, vector<1x4x4xf32>
    %36 = vector.shape_cast %35 : vector<1x4x4xf32> to vector<4x4xf32>
    %cst_32 = arith.constant dense<0.000000e+00> : vector<16x4xf32>
    %37 = tpu.matmul %34, %36, %cst_32 {dimension_numbers = #tpu.dot_dimension_numbers<[1], [0], [0], [1], [0, 0, 1, 1], [], []>} : vector<16x4xf32>, vector<4x4xf32>, vector<16x4xf32> -> vector<16x4xf32>
    %38 = arith.addf %33, %37 : vector<16x4xf32>
    %c4_33 = arith.constant 4 : index
    %c0_34 = arith.constant 0 : index
    %39 = vector.load %arg7[%c4_33, %c0_34] : memref<24x4xf32, #tpu.memory_space<vmem>>, vector<16x4xf32>
    %c4_35 = arith.constant 4 : index
    %c0_36 = arith.constant 0 : index
    %c0_37 = arith.constant 0 : index
    %40 = vector.load %arg2[%c4_35, %c0_36, %c0_37] : memref<9x4x4xf32, #tpu.memory_space<vmem>>, vector<1x4x4xf32>
    %41 = vector.shape_cast %40 : vector<1x4x4xf32> to vector<4x4xf32>
    %cst_38 = arith.constant dense<0.000000e+00> : vector<16x4xf32>
    %42 = tpu.matmul %39, %41, %cst_38 {dimension_numbers = #tpu.dot_dimension_numbers<[1], [0], [0], [1], [0, 0, 1, 1], [], []>} : vector<16x4xf32>, vector<4x4xf32>, vector<16x4xf32> -> vector<16x4xf32>
    %43 = arith.addf %38, %42 : vector<16x4xf32>
    %c6 = arith.constant 6 : index
    %c0_39 = arith.constant 0 : index
    %44 = vector.load %arg7[%c6, %c0_39] : memref<24x4xf32, #tpu.memory_space<vmem>>, vector<16x4xf32>
    %c5_40 = arith.constant 5 : index
    %c0_41 = arith.constant 0 : index
    %c0_42 = arith.constant 0 : index
    %45 = vector.load %arg2[%c5_40, %c0_41, %c0_42] : memref<9x4x4xf32, #tpu.memory_space<vmem>>, vector<1x4x4xf32>
    %46 = vector.shape_cast %45 : vector<1x4x4xf32> to vector<4x4xf32>
    %cst_43 = arith.constant dense<0.000000e+00> : vector<16x4xf32>
    %47 = tpu.matmul %44, %46, %cst_43 {dimension_numbers = #tpu.dot_dimension_numbers<[1], [0], [0], [1], [0, 0, 1, 1], [], []>} : vector<16x4xf32>, vector<4x4xf32>, vector<16x4xf32> -> vector<16x4xf32>
    %48 = arith.addf %43, %47 : vector<16x4xf32>
    %c1_44 = arith.constant 1 : index
    %c0_45 = arith.constant 0 : index
    %c0_46 = arith.constant 0 : index
    %49 = vector.load %arg3[%c1_44, %c0_45, %c0_46] : memref<3x1x4xf32, #tpu.memory_space<vmem>>, vector<1x1x4xf32>
    %50 = vector.shape_cast %49 : vector<1x1x4xf32> to vector<1x4xf32>
    %51 = vector.broadcast %50 : vector<1x4xf32> to vector<16x4xf32>
    %52 = arith.addf %48, %51 : vector<16x4xf32>
    %53 = arith.negf %52 : vector<16x4xf32>
    %54 = math.exp %53 : vector<16x4xf32>
    %cst_47 = arith.constant 1.000000e+00 : f32
    %55 = vector.broadcast %cst_47 : f32 to vector<16x4xf32>
    %56 = arith.addf %55, %54 : vector<16x4xf32>
    %57 = arith.divf %55, %56 : vector<16x4xf32>
    %58 = arith.mulf %52, %57 : vector<16x4xf32>
    %59 = arith.addf %58, %31 : vector<16x4xf32>
    %c4_48 = arith.constant 4 : index
    %c0_49 = arith.constant 0 : index
    %60 = vector.load %arg7[%c4_48, %c0_49] : memref<24x4xf32, #tpu.memory_space<vmem>>, vector<16x4xf32>
    tpu.vector_store %arg7[%c4_48, %c0_49], %59 {strides = array<i32>} : memref<24x4xf32, #tpu.memory_space<vmem>>, vector<16x4xf32>,
    %cst_50 = arith.constant 0.000000e+00 : f32
    %61 = vector.broadcast %cst_50 : f32 to vector<16x4xf32>
    %c0_51 = arith.constant 0 : index
    %c0_52 = arith.constant 0 : index
    %62 = vector.load %arg7[%c0_51, %c0_52] : memref<24x4xf32, #tpu.memory_space<vmem>>, vector<16x4xf32>
    %c6_53 = arith.constant 6 : index
    %c0_54 = arith.constant 0 : index
    %c0_55 = arith.constant 0 : index
    %63 = vector.load %arg2[%c6_53, %c0_54, %c0_55] : memref<9x4x4xf32, #tpu.memory_space<vmem>>, vector<1x4x4xf32>
    %64 = vector.shape_cast %63 : vector<1x4x4xf32> to vector<4x4xf32>
    %cst_56 = arith.constant dense<0.000000e+00> : vector<16x4xf32>
    %65 = tpu.matmul %62, %64, %cst_56 {dimension_numbers = #tpu.dot_dimension_numbers<[1], [0], [0], [1], [0, 0, 1, 1], [], []>} : vector<16x4xf32>, vector<4x4xf32>, vector<16x4xf32> -> vector<16x4xf32>
    %66 = arith.addf %61, %65 : vector<16x4xf32>
    %c4_57 = arith.constant 4 : index
    %c0_58 = arith.constant 0 : index
    %67 = vector.load %arg7[%c4_57, %c0_58] : memref<24x4xf32, #tpu.memory_space<vmem>>, vector<16x4xf32>
    %c7 = arith.constant 7 : index
    %c0_59 = arith.constant 0 : index
    %c0_60 = arith.constant 0 : index
    %68 = vector.load %arg2[%c7, %c0_59, %c0_60] : memref<9x4x4xf32, #tpu.memory_space<vmem>>, vector<1x4x4xf32>
    %69 = vector.shape_cast %68 : vector<1x4x4xf32> to vector<4x4xf32>
    %cst_61 = arith.constant dense<0.000000e+00> : vector<16x4xf32>
    %70 = tpu.matmul %67, %69, %cst_61 {dimension_numbers = #tpu.dot_dimension_numbers<[1], [0], [0], [1], [0, 0, 1, 1], [], []>} : vector<16x4xf32>, vector<4x4xf32>, vector<16x4xf32> -> vector<16x4xf32>
    %71 = arith.addf %66, %70 : vector<16x4xf32>
    %c8 = arith.constant 8 : index
    %c0_62 = arith.constant 0 : index
    %72 = vector.load %arg7[%c8, %c0_62] : memref<24x4xf32, #tpu.memory_space<vmem>>, vector<16x4xf32>
    %c8_63 = arith.constant 8 : index
    %c0_64 = arith.constant 0 : index
    %c0_65 = arith.constant 0 : index
    %73 = vector.load %arg2[%c8_63, %c0_64, %c0_65] : memref<9x4x4xf32, #tpu.memory_space<vmem>>, vector<1x4x4xf32>
    %74 = vector.shape_cast %73 : vector<1x4x4xf32> to vector<4x4xf32>
    %cst_66 = arith.constant dense<0.000000e+00> : vector<16x4xf32>
    %75 = tpu.matmul %72, %74, %cst_66 {dimension_numbers = #tpu.dot_dimension_numbers<[1], [0], [0], [1], [0, 0, 1, 1], [], []>} : vector<16x4xf32>, vector<4x4xf32>, vector<16x4xf32> -> vector<16x4xf32>
    %76 = arith.addf %71, %75 : vector<16x4xf32>
    %c2_67 = arith.constant 2 : index
    %c0_68 = arith.constant 0 : index
    %c0_69 = arith.constant 0 : index
    %77 = vector.load %arg3[%c2_67, %c0_68, %c0_69] : memref<3x1x4xf32, #tpu.memory_space<vmem>>, vector<1x1x4xf32>
    %78 = vector.shape_cast %77 : vector<1x1x4xf32> to vector<1x4xf32>
    %79 = vector.broadcast %78 : vector<1x4xf32> to vector<16x4xf32>
    %80 = arith.addf %76, %79 : vector<16x4xf32>
    %81 = arith.negf %80 : vector<16x4xf32>
    %82 = math.exp %81 : vector<16x4xf32>
    %cst_70 = arith.constant 1.000000e+00 : f32
    %83 = vector.broadcast %cst_70 : f32 to vector<16x4xf32>
    %84 = arith.addf %83, %82 : vector<16x4xf32>
    %85 = arith.divf %83, %84 : vector<16x4xf32>
    %86 = arith.mulf %80, %85 : vector<16x4xf32>
    %87 = arith.addf %86, %59 : vector<16x4xf32>
    %c4_71 = arith.constant 4 : index
    %c0_72 = arith.constant 0 : index
    %88 = vector.load %arg7[%c4_71, %c0_72] : memref<24x4xf32, #tpu.memory_space<vmem>>, vector<16x4xf32>
    tpu.vector_store %arg7[%c4_71, %c0_72], %87 {strides = array<i32>} : memref<24x4xf32, #tpu.memory_space<vmem>>, vector<16x4xf32>,
    %cst_73 = arith.constant 0.000000e+00 : f32
    %89 = vector.broadcast %cst_73 : f32 to vector<8x4xf32>
    %c3_74 = arith.constant 3 : index
    %c0_75 = arith.constant 0 : index
    %90 = tpu.strided_load %arg7[%c3_74, %c0_75] {strides = array<i32: 2, 1>} : memref<24x4xf32, #tpu.memory_space<vmem>>, vector<8x4xf32>
    %c0_76 = arith.constant 0 : index
    %c0_77 = arith.constant 0 : index
    %c0_78 = arith.constant 0 : index
    %91 = vector.load %arg4[%c0_76, %c0_77, %c0_78] : memref<3x4x4xf32, #tpu.memory_space<vmem>>, vector<1x4x4xf32>
    %92 = vector.shape_cast %91 : vector<1x4x4xf32> to vector<4x4xf32>
    %cst_79 = arith.constant dense<0.000000e+00> : vector<8x4xf32>
    %93 = tpu.matmul %90, %92, %cst_79 {dimension_numbers = #tpu.dot_dimension_numbers<[1], [0], [0], [1], [0, 0, 1, 1], [], []>} : vector<8x4xf32>, vector<4x4xf32>, vector<8x4xf32> -> vector<8x4xf32>
    %94 = arith.addf %89, %93 : vector<8x4xf32>
    %c4_80 = arith.constant 4 : index
    %c0_81 = arith.constant 0 : index
    %95 = tpu.strided_load %arg7[%c4_80, %c0_81] {strides = array<i32: 2, 1>} : memref<24x4xf32, #tpu.memory_space<vmem>>, vector<8x4xf32>
    %c1_82 = arith.constant 1 : index
    %c0_83 = arith.constant 0 : index
    %c0_84 = arith.constant 0 : index
    %96 = vector.load %arg4[%c1_82, %c0_83, %c0_84] : memref<3x4x4xf32, #tpu.memory_space<vmem>>, vector<1x4x4xf32>
    %97 = vector.shape_cast %96 : vector<1x4x4xf32> to vector<4x4xf32>
    %cst_85 = arith.constant dense<0.000000e+00> : vector<8x4xf32>
    %98 = tpu.matmul %95, %97, %cst_85 {dimension_numbers = #tpu.dot_dimension_numbers<[1], [0], [0], [1], [0, 0, 1, 1], [], []>} : vector<8x4xf32>, vector<4x4xf32>, vector<8x4xf32> -> vector<8x4xf32>
    %99 = arith.addf %94, %98 : vector<8x4xf32>
    %c5_86 = arith.constant 5 : index
    %c0_87 = arith.constant 0 : index
    %100 = tpu.strided_load %arg7[%c5_86, %c0_87] {strides = array<i32: 2, 1>} : memref<24x4xf32, #tpu.memory_space<vmem>>, vector<8x4xf32>
    %c2_88 = arith.constant 2 : index
    %c0_89 = arith.constant 0 : index
    %c0_90 = arith.constant 0 : index
    %101 = vector.load %arg4[%c2_88, %c0_89, %c0_90] : memref<3x4x4xf32, #tpu.memory_space<vmem>>, vector<1x4x4xf32>
    %102 = vector.shape_cast %101 : vector<1x4x4xf32> to vector<4x4xf32>
    %cst_91 = arith.constant dense<0.000000e+00> : vector<8x4xf32>
    %103 = tpu.matmul %100, %102, %cst_91 {dimension_numbers = #tpu.dot_dimension_numbers<[1], [0], [0], [1], [0, 0, 1, 1], [], []>} : vector<8x4xf32>, vector<4x4xf32>, vector<8x4xf32> -> vector<8x4xf32>
    %104 = arith.addf %99, %103 : vector<8x4xf32>
    %c0_92 = arith.constant 0 : index
    %c0_93 = arith.constant 0 : index
    %105 = vector.load %arg5[%c0_92, %c0_93] : memref<1x4xf32, #tpu.memory_space<vmem>>, vector<1x4xf32>
    %106 = vector.broadcast %105 : vector<1x4xf32> to vector<8x4xf32>
    %107 = arith.addf %104, %106 : vector<8x4xf32>
    %c0_94 = arith.constant 0 : index
    %c0_95 = arith.constant 0 : index
    %c0_96 = arith.constant 0 : index
    %108 = vector.load %arg6[%c0_94, %c0_95, %c0_96] : memref<1x8x4xf32, #tpu.memory_space<vmem>>, vector<1x8x4xf32>
    %109 = vector.shape_cast %108 : vector<1x8x4xf32> to vector<8x4xf32>
    %110 = vector.shape_cast %107 : vector<8x4xf32> to vector<1x8x4xf32>
    tpu.vector_store %arg6[%c0_94, %c0_95, %c0_96], %110 {strides = array<i32>} : memref<1x8x4xf32, #tpu.memory_space<vmem>>, vector<1x8x4xf32>,
    return
  }
  func.func @transform_0(%arg0: i32) -> (i32, i32, i32) {
    %c0_i32 = arith.constant 0 : i32
    %c0_i32_0 = arith.constant 0 : i32
    %c0_i32_1 = arith.constant 0 : i32
    return %arg0, %c0_i32, %c0_i32_0 : i32, i32, i32
  }
  func.func @transform_1(%arg0: i32) -> (i32, i32, i32) {
    %c0_i32 = arith.constant 0 : i32
    %c0_i32_0 = arith.constant 0 : i32
    %c0_i32_1 = arith.constant 0 : i32
    %c0_i32_2 = arith.constant 0 : i32
    return %c0_i32, %c0_i32_0, %c0_i32_1 : i32, i32, i32
  }
  func.func @transform_2(%arg0: i32) -> (i32, i32, i32) {
    %c0_i32 = arith.constant 0 : i32
    %c0_i32_0 = arith.constant 0 : i32
    %c0_i32_1 = arith.constant 0 : i32
    %c0_i32_2 = arith.constant 0 : i32
    return %c0_i32, %c0_i32_0, %c0_i32_1 : i32, i32, i32
  }
  func.func @transform_3(%arg0: i32) -> (i32, i32, i32) {
    %c0_i32 = arith.constant 0 : i32
    %c0_i32_0 = arith.constant 0 : i32
    %c0_i32_1 = arith.constant 0 : i32
    %c0_i32_2 = arith.constant 0 : i32
    return %c0_i32, %c0_i32_0, %c0_i32_1 : i32, i32, i32
  }
  func.func @transform_4(%arg0: i32) -> (i32, i32) {
    %c0_i32 = arith.constant 0 : i32
    %c0_i32_0 = arith.constant 0 : i32
    %c0_i32_1 = arith.constant 0 : i32
    return %c0_i32, %c0_i32_0 : i32, i32
  }
  func.func @transform_5(%arg0: i32) -> (i32, i32, i32) {
    %c0_i32 = arith.constant 0 : i32
    %c0_i32_0 = arith.constant 0 : i32
    %c0_i32_1 = arith.constant 0 : i32
    return %arg0, %c0_i32, %c0_i32_0 : i32, i32, i32
  }
}

</mosaic_0001>

<llo_original>
// kernel: tpu_custom_call.1
$region0: #{tpu_custom_call.1}
  #allocation0 [shape = 'u32[]', space=smem, size = 0x4, offset = 0x4, fixed_abs, tag = 'smem constant byte address 0x4 - core index']
  #allocation1 [shape = 'u32[144,128]{1,0:T(1,128)}', space=vmem, size = 0x12000, scoped, tag = 'internal scratch']
  #allocation2 [shape = 'f32[24,4]{1,0:T(8,128)}', space=vmem, size = 0x3000, scoped, tag = 'scratch operand']
  %s0 = inlined_call_operand.vmem [shape: f32[2,16,4], index: 0, kind: input, shape index: {}]
  %s1 = inlined_call_operand.vmem [shape: f32[9,4,4], index: 1, kind: input, shape index: {}]
  %s2 = inlined_call_operand.vmem [shape: f32[3,1,4], index: 2, kind: input, shape index: {}]
  %s3 = inlined_call_operand.vmem [shape: f32[3,4,4], index: 3, kind: input, shape index: {}]
  %s4 = inlined_call_operand.vmem [shape: f32[1,4], index: 4, kind: input, shape index: {}]
  %s5 = inlined_call_operand.vmem [shape: f32[2,8,4], index: 5, kind: output, shape index: {}]
  %s6 = sld [smem:[#allocation0]]
  $region53: #{tpu_custom_call.1} parent=0
    _
  %s8 = ssub.s32 1, %s6
  %s9 = scalar_select 0, %s8, %s6
  loop: start=0, step=1, limit=4
  $region2: #{tpu_custom_call.1} parent=0 // loop_pre_header
    _
  $region3: #{tpu_custom_call.1} parent=0 // loop_header
    %s11 = sphi 0, %s15
    %p12 = scmp.ge.s32.totalorder %s11, 4
    %s21 = sphi 0, %s23
    %s24 = sphi 0, %s21
    %s25 = sphi 0, %s24
    %s41 = sphi 0, %s25
    %s45 = sphi 0, %s45
    %s47 = sphi 0, %s45
    %s48 = sphi 0, %s47
    %s62 = sphi 0, %s48
    %s66 = sphi 0, %s66
    %s68 = sphi 0, %s66
    %s69 = sphi 0, %s68
    %s83 = sphi 0, %s69
    %s87 = sphi 0, %s87
    %s89 = sphi 0, %s87
    %s90 = sphi 0, %s89
    %s104 = sphi 0, %s90
    %s108 = sphi 0, %s108
    %s110 = sphi 0, %s108
    %s111 = sphi 0, %s110
    %s125 = sphi 0, %s111
    %s131 = sphi 0, %s133
    %s134 = sphi 0, %s131
    %s135 = sphi 0, %s134
    %s151 = sphi 0, %s135
  $region4: #{tpu_custom_call.1} parent=0 // loop_header_branch
    %14 = sbr.rel (%p12) target = $region8
  $region5: #{tpu_custom_call.1} parent=0 // loop_body
    %s16 = ssub.s32 %s11, 1
    %s17 = ssub.s32 %s11, 2
    %s18 = sadd.s32 %s11, 1
    %s19 = ssub.s32 %s11, %s18
    %p20 = scmp.eq.s32.totalorder %s19, 0
    %s22 = sadd.s32 %s21, 1
    %s23 = scalar_select %p20, %s21, %s22
    %p26 = pneg %p20
    %p27 = scmp.eq.s32.totalorder %s11, 1
    %p28 = por %p26, %p27
    %p29 = scmp.ne.s32.totalorder %s21, %s24
    %p30 = scmp.eq.s32.totalorder %s11, 0
    %p31 = por %p29, %p30
    %p32 = scmp.ne.s32.totalorder %s21, %s24
    %p33 = scmp.eq.s32.totalorder %s16, 1
    %p34 = por %p32, %p33
    %p35 = scmp.ne.s32.totalorder %s24, %s25
    %p36 = scmp.eq.s32.totalorder %s16, 0
    %p37 = por %p35, %p36
    %p38 = scmp.ne.s32.totalorder %s24, %s25
    %p39 = scmp.eq.s32.totalorder %s17, 1
    %p40 = por %p38, %p39
    %p42 = scmp.ne.s32.totalorder %s25, %s41
    %p43 = scmp.eq.s32.totalorder %s17, 0
    %p44 = por %p42, %p43
    %s46 = sadd.s32 %s45, 1
    %p49 = scmp.eq.s32.totalorder %s11, 1
    %p50 = scmp.ne.s32.totalorder %s45, %s47
    %p51 = scmp.eq.s32.totalorder %s11, 0
    %p52 = por %p50, %p51
    %p53 = scmp.ne.s32.totalorder %s45, %s47
    %p54 = scmp.eq.s32.totalorder %s16, 1
    %p55 = por %p53, %p54
    %p56 = scmp.ne.s32.totalorder %s47, %s48
    %p57 = scmp.eq.s32.totalorder %s16, 0
    %p58 = por %p56, %p57
    %p59 = scmp.ne.s32.totalorder %s47, %s48
    %p60 = scmp.eq.s32.totalorder %s17, 1
    %p61 = por %p59, %p60
    %p63 = scmp.ne.s32.totalorder %s48, %s62
    %p64 = scmp.eq.s32.totalorder %s17, 0
    %p65 = por %p63, %p64
    %s67 = sadd.s32 %s66, 1
    %p70 = scmp.eq.s32.totalorder %s11, 1
    %p71 = scmp.ne.s32.totalorder %s66, %s68
    %p72 = scmp.eq.s32.totalorder %s11, 0
    %p73 = por %p71, %p72
    %p74 = scmp.ne.s32.totalorder %s66, %s68
    %p75 = scmp.eq.s32.totalorder %s16, 1
    %p76 = por %p74, %p75
    %p77 = scmp.ne.s32.totalorder %s68, %s69
    %p78 = scmp.eq.s32.totalorder %s16, 0
    %p79 = por %p77, %p78
    %p80 = scmp.ne.s32.totalorder %s68, %s69
    %p81 = scmp.eq.s32.totalorder %s17, 1
    %p82 = por %p80, %p81
    %p84 = scmp.ne.s32.totalorder %s69, %s83
    %p85 = scmp.eq.s32.totalorder %s17, 0
    %p86 = por %p84, %p85
    %s88 = sadd.s32 %s87, 1
    %p91 = scmp.eq.s32.totalorder %s11, 1
    %p92 = scmp.ne.s32.totalorder %s87, %s89
    %p93 = scmp.eq.s32.totalorder %s11, 0
    %p94 = por %p92, %p93
    %p95 = scmp.ne.s32.totalorder %s87, %s89
    %p96 = scmp.eq.s32.totalorder %s16, 1
    %p97 = por %p95, %p96
    %p98 = scmp.ne.s32.totalorder %s89, %s90
    %p99 = scmp.eq.s32.totalorder %s16, 0
    %p100 = por %p98, %p99
    %p101 = scmp.ne.s32.totalorder %s89, %s90
    %p102 = scmp.eq.s32.totalorder %s17, 1
    %p103 = por %p101, %p102
    %p105 = scmp.ne.s32.totalorder %s90, %s104
    %p106 = scmp.eq.s32.totalorder %s17, 0
    %p107 = por %p105, %p106
    %s109 = sadd.s32 %s108, 1
    %p112 = scmp.eq.s32.totalorder %s11, 1
    %p113 = scmp.ne.s32.totalorder %s108, %s110
    %p114 = scmp.eq.s32.totalorder %s11, 0
    %p115 = por %p113, %p114
    %p116 = scmp.ne.s32.totalorder %s108, %s110
    %p117 = scmp.eq.s32.totalorder %s16, 1
    %p118 = por %p116, %p117
    %p119 = scmp.ne.s32.totalorder %s110, %s111
    %p120 = scmp.eq.s32.totalorder %s16, 0
    %p121 = por %p119, %p120
    %p122 = scmp.ne.s32.totalorder %s110, %s111
    %p123 = scmp.eq.s32.totalorder %s17, 1
    %p124 = por %p122, %p123
    %p126 = scmp.ne.s32.totalorder %s111, %s125
    %p127 = scmp.eq.s32.totalorder %s17, 0
    %p128 = por %p126, %p127
    %s129 = ssub.s32 %s11, %s18
    %p130 = scmp.eq.s32.totalorder %s129, 0
    %s132 = sadd.s32 %s131, 1
    %s133 = scalar_select %p130, %s131, %s132
    %p136 = pneg %p130
    %p137 = scmp.eq.s32.totalorder %s11, 1
    %p138 = por %p136, %p137
    %p139 = scmp.ne.s32.totalorder %s131, %s134
    %p140 = scmp.eq.s32.totalorder %s11, 0
    %p141 = por %p139, %p140
    %p142 = scmp.ne.s32.totalorder %s131, %s134
    %p143 = scmp.eq.s32.totalorder %s16, 1
    %p144 = por %p142, %p143
    %p145 = scmp.ne.s32.totalorder %s134, %s135
    %p146 = scmp.eq.s32.totalorder %s16, 0
    %p147 = por %p145, %p146
    %p148 = scmp.ne.s32.totalorder %s134, %s135
    %p149 = scmp.eq.s32.totalorder %s17, 1
    %p150 = por %p148, %p149
    %p152 = scmp.ne.s32.totalorder %s135, %s151
    %p153 = scmp.eq.s32.totalorder %s17, 0
    %p154 = por %p152, %p153
    %p155 = scmp.le.s32.totalorder 1, %s11
    %p156 = scmp.lt.s32.totalorder %s11, 3
    %p157 = pnand %p155, %p156
    %p158 = pneg %p157
    // Predicated region
    $region9: #{tpu_custom_call.1} parent=5 // pred_check
      _
    $region10: #{tpu_custom_call.1} parent=5 // pred_check_branch
      %160 = sbr.rel (%p157) target = $region12
    $region11: #{tpu_custom_call.1} parent=5 // pred_region
      %s161 = ssub.s32 %s11, 1
      // Predicated region
      $region13: #{tpu_custom_call.1} parent=11 // pred_check
        %p162 = pneg %p58
      $region14: #{tpu_custom_call.1} parent=11 // pred_check_branch
        %164 = sbr.rel (%p162) target = $region16
      $region15: #{tpu_custom_call.1} parent=11 // pred_region
        _
      $region16: #{tpu_custom_call.1} parent=11 // pred_fallthru
        _
      // Predicated region
      $region17: #{tpu_custom_call.1} parent=11 // pred_check
        %p165 = pneg %p79
      $region18: #{tpu_custom_call.1} parent=11 // pred_check_branch
        %167 = sbr.rel (%p165) target = $region20
      $region19: #{tpu_custom_call.1} parent=11 // pred_region
        _
      $region20: #{tpu_custom_call.1} parent=11 // pred_fallthru
        _
      // Predicated region
      $region21: #{tpu_custom_call.1} parent=11 // pred_check
        %p168 = pneg %p100
      $region22: #{tpu_custom_call.1} parent=11 // pred_check_branch
        %170 = sbr.rel (%p168) target = $region24
      $region23: #{tpu_custom_call.1} parent=11 // pred_region
        _
      $region24: #{tpu_custom_call.1} parent=11 // pred_fallthru
        _
      // Predicated region
      $region25: #{tpu_custom_call.1} parent=11 // pred_check
        %p171 = pneg %p121
      $region26: #{tpu_custom_call.1} parent=11 // pred_check_branch
        %173 = sbr.rel (%p171) target = $region28
      $region27: #{tpu_custom_call.1} parent=11 // pred_region
        _
      $region28: #{tpu_custom_call.1} parent=11 // pred_fallthru
        _
    $region12: #{tpu_custom_call.1} parent=5 // pred_fallthru
      _
    %p174 = scmp.lt.s32.totalorder %s11, 2
    // Predicated region
    $region29: #{tpu_custom_call.1} parent=5 // pred_check
      %p175 = pneg %p174
    $region30: #{tpu_custom_call.1} parent=5 // pred_check_branch
      %177 = sbr.rel (%p175) target = $region32
    $region31: #{tpu_custom_call.1} parent=5 // pred_region
      // Predicated region
      $region33: #{tpu_custom_call.1} parent=31 // pred_check
        %p178 = pneg %p31
      $region34: #{tpu_custom_call.1} parent=31 // pred_check_branch
        %180 = sbr.rel (%p178) target = $region36
      $region35: #{tpu_custom_call.1} parent=31 // pred_region
        %p181 = scmp.lt.s32.totalorder %s11, 1
        %s182 = scalar_select %p181, %s11, 1
        %s183 = smul.addr %s182, 2
        %s184 = smul.addr %s183, 8
        %s185 = scalar_lea.vmem %s0, %s184
      $region36: #{tpu_custom_call.1} parent=31 // pred_fallthru
        _
    $region32: #{tpu_custom_call.1} parent=5 // pred_fallthru
      _
    %p186 = scmp.le.s32.totalorder 1, %s11
    %p187 = scmp.lt.s32.totalorder %s11, 3
    %p188 = pnand %p186, %p187
    %p189 = pneg %p188
    // Predicated region
    $region37: #{tpu_custom_call.1} parent=5 // pred_check
      _
    $region38: #{tpu_custom_call.1} parent=5 // pred_check_branch
      %191 = sbr.rel (%p188) target = $region40
    $region39: #{tpu_custom_call.1} parent=5 // pred_region
      %s192 = ssub.s32 %s11, 1
      %p193 = scmp.lt.s32.totalorder %s16, 1
      %s194 = scalar_select %p193, %s16, 1
      %s195 = smul.addr %s194, 2
      %s196 = smul.addr %s195, 8
      %s197 = scalar_lea.vmem %s0, %s196
      %p198 = pneg %p37
      %p199 = pneg %p34
      %p200 = pneg %p58
      %p201 = pneg %p55
      %p202 = pneg %p79
      %p203 = pneg %p76
      %p204 = pneg %p100
      %p205 = pneg %p97
      %p206 = pneg %p121
      %p207 = pneg %p118
      %p208 = pneg %p147
      %p209 = pneg %p144
      %p210 = scmp.lt.s32.totalorder %s16, 1
      %s211 = scalar_select %p210, %s16, 1
      %s212 = smul.addr %s211, 8
      %s213 = scalar_lea.vmem %s5, %s212
      %p214 = scmp.lt.s32.totalorder %s16, 1
      %s215 = scalar_select %p214, %s16, 1
      %s216 = smul.addr %s215, 2
      %s217 = smul.addr %s216, 8
      %s218 = scalar_lea.vmem %s0, %s217
      %p219 = scmp.lt.s32.totalorder %s16, 1
      %s220 = scalar_select %p219, %s16, 1
      %s221 = smul.addr %s220, 8
      %s222 = scalar_lea.vmem %s5, %s221
      %vm223 = vcmask 31744
      %224 = vst.msk [vmem:[#allocation2] sm:$0xff] %vm223, 0.0
      %225 = vst.msk [vmem:[#allocation2 + $0x8] sm:$0xff] %vm223, 0.0
      %226 = vst.msk [vmem:[#allocation2 + $0x10] sm:$0xff] %vm223, 0.0
      %v227 = vld [vmem:[%s218] sm:$0xff]
      %v228 = vld [vmem:[%s218 + $0x8] sm:$0xff]
      %229 = vst.msk [vmem:[#allocation2 + $0x4] sm:$0xff] %vm223, %v227
      %230 = vst.msk [vmem:[#allocation2 + $0xc] sm:$0xff] %vm223, %v228
      %v231 = vld [vmem:[#allocation2 + $0x3] sm:$0xff]
      %v232 = vld [vmem:[#allocation2 + $0xb] sm:$0xff]
      %v233 = vld [vmem:[%s1] sm:$0xf]
      %v234 = vld [vmem:[#allocation2 + $0x4] sm:$0xff]
      %v235 = vld [vmem:[#allocation2 + $0xc] sm:$0xff]
      %s236 = scalar_lea.vmem %s1, 4
      %v237 = vld [vmem:[%s236] sm:$0xf]
      %v239 = vsel %vm223, %v234, 0
      %v242 = vsel %vm223, %v235, 0
      %vm244 = vcmask 1043456
      %v246 = vsel %vm244, %v237, 0
      %248 = vmatprep.subr.mxu0 0.0
      %249 = vmatpush1.msra.mxu0 %v246
      %250 = vmatprep.subr.mxu0 0.0
      %251 = vmatpush1.msra.mxu0 0.0
      %252 = vmatprep.subr.mxu0 0.0
      %253 = vmatpush1.msra.mxu0 0.0
      %254 = vmatprep.subr.mxu0 0.0
      %255 = vmatpush1.msra.mxu0 0.0
      %256 = vmatprep.subr.mxu0 0.0
      %257 = vmatpush1.msra.mxu0 0.0
      %258 = vmatprep.subr.mxu0 0.0
      %259 = vmatpush1.msra.mxu0 0.0
      %260 = vmatprep.subr.mxu0 0.0
      %261 = vmatpush1.msra.mxu0 0.0
      %262 = vmatprep.subr.mxu0 0.0
      %263 = vmatpush1.msra.mxu0 0.0
      %264 = vmatprep.subr.mxu0 0.0
      %265 = vmatpush1.msra.mxu0 0.0
      %266 = vmatprep.subr.mxu0 0.0
      %267 = vmatpush1.msra.mxu0 0.0
      %268 = vmatprep.subr.mxu0 0.0
      %269 = vmatpush1.msra.mxu0 0.0
      %270 = vmatprep.subr.mxu0 0.0
      %271 = vmatpush1.msra.mxu0 0.0
      %272 = vmatprep.subr.mxu0 0.0
      %273 = vmatpush1.msra.mxu0 0.0
      %274 = vmatprep.subr.mxu0 0.0
      %275 = vmatpush1.msra.mxu0 0.0
      %276 = vmatprep.subr.mxu0 0.0
      %277 = vmatpush1.msra.mxu0 0.0
      %278 = vmatprep.subr.mxu0 0.0
      %279 = vmatpush1.msra.mxu0 0.0
      %280 = vmatprep.subr.mxu0 0.0
      %281 = vmatpush1.msra.mxu0 0.0
      %282 = vmatprep.subr.mxu0 0.0
      %283 = vmatpush1.msra.mxu0 0.0
      %284 = vmatprep.subr.mxu0 0.0
      %285 = vmatpush1.msra.mxu0 0.0
      %286 = vmatprep.subr.mxu0 0.0
      %287 = vmatpush1.msra.mxu0 0.0
      %288 = vmatprep.subr.mxu0 0.0
      %289 = vmatpush1.msra.mxu0 0.0
      %290 = vmatprep.subr.mxu0 0.0
      %291 = vmatpush1.msra.mxu0 0.0
      %292 = vmatprep.subr.mxu0 0.0
      %293 = vmatpush1.msra.mxu0 0.0
      %294 = vmatprep.subr.mxu0 0.0
      %295 = vmatpush1.msra.mxu0 0.0
      %296 = vmatprep.subr.mxu0 0.0
      %297 = vmatpush1.msra.mxu0 0.0
      %298 = vmatprep.subr.mxu0 0.0
      %299 = vmatpush1.msra.mxu0 0.0
      %300 = vmatprep.subr.mxu0 0.0
      %301 = vmatpush1.msra.mxu0 0.0
      %302 = vmatprep.subr.mxu0 0.0
      %303 = vmatpush1.msra.mxu0 0.0
      %304 = vmatprep.subr.mxu0 0.0
      %305 = vmatpush1.msra.mxu0 0.0
      %306 = vmatprep.subr.mxu0 0.0
      %307 = vmatpush1.msra.mxu0 0.0
      %308 = vmatprep.subr.mxu0 0.0
      %309 = vmatpush1.msra.mxu0 0.0
      %310 = vmatprep.subr.mxu0 0.0
      %311 = vmatpush1.msra.mxu0 0.0
      %312 = vmatprep.mubr.f32.mxu0 0.0
      %313 = vmatmul.mubr.f32.gmra.mrb[0].mxu0 %v239
      %v314 = vpop.f32.mrb[0].mxu0
      %v315 = vadd.f32 0.0, %v314
      %v316 = vpop.f32.mrb[0].mxu0
      %317 = vmatprep.mubr.f32.mxu0 0.0
      %318 = vmatmul.mubr.f32.gmra.mrb[0].mxu0 %v242
      %v319 = vpop.f32.mrb[0].mxu0
      %v320 = vadd.f32 0.0, %v319
      %v321 = vpop.f32.mrb[0].mxu0
      %322 = vdwg.mxu0
      %v324 = vsel %vm223, %v231, 0
      %v327 = vsel %vm223, %v232, 0
      %v330 = vsel %vm244, %v233, 0
      %332 = vmatprep.subr.mxu0 0.0
      %333 = vmatpush1.msra.mxu0 %v330
      %334 = vmatprep.subr.mxu0 0.0
      %335 = vmatpush1.msra.mxu0 0.0
      %336 = vmatprep.subr.mxu0 0.0
      %337 = vmatpush1.msra.mxu0 0.0
      %338 = vmatprep.subr.mxu0 0.0
      %339 = vmatpush1.msra.mxu0 0.0
      %340 = vmatprep.subr.mxu0 0.0
      %341 = vmatpush1.msra.mxu0 0.0
      %342 = vmatprep.subr.mxu0 0.0
      %343 = vmatpush1.msra.mxu0 0.0
      %344 = vmatprep.subr.mxu0 0.0
      %345 = vmatpush1.msra.mxu0 0.0
      %346 = vmatprep.subr.mxu0 0.0
      %347 = vmatpush1.msra.mxu0 0.0
      %348 = vmatprep.subr.mxu0 0.0
      %349 = vmatpush1.msra.mxu0 0.0
      %350 = vmatprep.subr.mxu0 0.0
      %351 = vmatpush1.msra.mxu0 0.0
      %352 = vmatprep.subr.mxu0 0.0
      %353 = vmatpush1.msra.mxu0 0.0
      %354 = vmatprep.subr.mxu0 0.0
      %355 = vmatpush1.msra.mxu0 0.0
      %356 = vmatprep.subr.mxu0 0.0
      %357 = vmatpush1.msra.mxu0 0.0
      %358 = vmatprep.subr.mxu0 0.0
      %359 = vmatpush1.msra.mxu0 0.0
      %360 = vmatprep.subr.mxu0 0.0
      %361 = vmatpush1.msra.mxu0 0.0
      %362 = vmatprep.subr.mxu0 0.0
      %363 = vmatpush1.msra.mxu0 0.0
      %364 = vmatprep.subr.mxu0 0.0
      %365 = vmatpush1.msra.mxu0 0.0
      %366 = vmatprep.subr.mxu0 0.0
      %367 = vmatpush1.msra.mxu0 0.0
      %368 = vmatprep.subr.mxu0 0.0
      %369 = vmatpush1.msra.mxu0 0.0
      %370 = vmatprep.subr.mxu0 0.0
      %371 = vmatpush1.msra.mxu0 0.0
      %372 = vmatprep.subr.mxu0 0.0
      %373 = vmatpush1.msra.mxu0 0.0
      %374 = vmatprep.subr.mxu0 0.0
      %375 = vmatpush1.msra.mxu0 0.0
      %376 = vmatprep.subr.mxu0 0.0
      %377 = vmatpush1.msra.mxu0 0.0
      %378 = vmatprep.subr.mxu0 0.0
      %379 = vmatpush1.msra.mxu0 0.0
      %380 = vmatprep.subr.mxu0 0.0
      %381 = vmatpush1.msra.mxu0 0.0
      %382 = vmatprep.subr.mxu0 0.0
      %383 = vmatpush1.msra.mxu0 0.0
      %384 = vmatprep.subr.mxu0 0.0
      %385 = vmatpush1.msra.mxu0 0.0
      %386 = vmatprep.subr.mxu0 0.0
      %387 = vmatpush1.msra.mxu0 0.0
      %388 = vmatprep.subr.mxu0 0.0
      %389 = vmatpush1.msra.mxu0 0.0
      %390 = vmatprep.subr.mxu0 0.0
      %391 = vmatpush1.msra.mxu0 0.0
      %392 = vmatprep.subr.mxu0 0.0
      %393 = vmatpush1.msra.mxu0 0.0
      %394 = vmatprep.subr.mxu0 0.0
      %395 = vmatpush1.msra.mxu0 0.0
      %396 = vmatprep.mubr.f32.mxu0 0.0
      %397 = vmatmul.mubr.f32.gmra.mrb[0].mxu0 %v324
      %v398 = vpop.f32.mrb[0].mxu0
      %v399 = vadd.f32 %v315, %v398
      %v400 = vpop.f32.mrb[0].mxu0
      %401 = vmatprep.mubr.f32.mxu0 0.0
      %402 = vmatmul.mubr.f32.gmra.mrb[0].mxu0 %v327
      %v403 = vpop.f32.mrb[0].mxu0
      %v404 = vadd.f32 %v320, %v403
      %v405 = vpop.f32.mrb[0].mxu0
      %406 = vdwg.mxu0
      %v407 = vld [vmem:[#allocation2 + $0x5] sm:$0xff]
      %v408 = vld [vmem:[#allocation2 + $0xd] sm:$0xff]
      %s409 = scalar_lea.vmem %s1, 8
      %v410 = vld [vmem:[%s409] sm:$0xf]
      %v412 = vsel %vm223, %v407, 0
      %v415 = vsel %vm223, %v408, 0
      %v418 = vsel %vm244, %v410, 0
      %420 = vmatprep.subr.mxu0 0.0
      %421 = vmatpush1.msra.mxu0 %v418
      %422 = vmatprep.subr.mxu0 0.0
      %423 = vmatpush1.msra.mxu0 0.0
      %424 = vmatprep.subr.mxu0 0.0
      %425 = vmatpush1.msra.mxu0 0.0
      %426 = vmatprep.subr.mxu0 0.0
      %427 = vmatpush1.msra.mxu0 0.0
      %428 = vmatprep.subr.mxu0 0.0
      %429 = vmatpush1.msra.mxu0 0.0
      %430 = vmatprep.subr.mxu0 0.0
      %431 = vmatpush1.msra.mxu0 0.0
      %432 = vmatprep.subr.mxu0 0.0
      %433 = vmatpush1.msra.mxu0 0.0
      %434 = vmatprep.subr.mxu0 0.0
      %435 = vmatpush1.msra.mxu0 0.0
      %436 = vmatprep.subr.mxu0 0.0
      %437 = vmatpush1.msra.mxu0 0.0
      %438 = vmatprep.subr.mxu0 0.0
      %439 = vmatpush1.msra.mxu0 0.0
      %440 = vmatprep.subr.mxu0 0.0
      %441 = vmatpush1.msra.mxu0 0.0
      %442 = vmatprep.subr.mxu0 0.0
      %443 = vmatpush1.msra.mxu0 0.0
      %444 = vmatprep.subr.mxu0 0.0
      %445 = vmatpush1.msra.mxu0 0.0
      %446 = vmatprep.subr.mxu0 0.0
      %447 = vmatpush1.msra.mxu0 0.0
      %448 = vmatprep.subr.mxu0 0.0
      %449 = vmatpush1.msra.mxu0 0.0
      %450 = vmatprep.subr.mxu0 0.0
      %451 = vmatpush1.msra.mxu0 0.0
      %452 = vmatprep.subr.mxu0 0.0
      %453 = vmatpush1.msra.mxu0 0.0
      %454 = vmatprep.subr.mxu0 0.0
      %455 = vmatpush1.msra.mxu0 0.0
      %456 = vmatprep.subr.mxu0 0.0
      %457 = vmatpush1.msra.mxu0 0.0
      %458 = vmatprep.subr.mxu0 0.0
      %459 = vmatpush1.msra.mxu0 0.0
      %460 = vmatprep.subr.mxu0 0.0
      %461 = vmatpush1.msra.mxu0 0.0
      %462 = vmatprep.subr.mxu0 0.0
      %463 = vmatpush1.msra.mxu0 0.0
      %464 = vmatprep.subr.mxu0 0.0
      %465 = vmatpush1.msra.mxu0 0.0
      %466 = vmatprep.subr.mxu0 0.0
      %467 = vmatpush1.msra.mxu0 0.0
      %468 = vmatprep.subr.mxu0 0.0
      %469 = vmatpush1.msra.mxu0 0.0
      %470 = vmatprep.subr.mxu0 0.0
      %471 = vmatpush1.msra.mxu0 0.0
      %472 = vmatprep.subr.mxu0 0.0
      %473 = vmatpush1.msra.mxu0 0.0
      %474 = vmatprep.subr.mxu0 0.0
      %475 = vmatpush1.msra.mxu0 0.0
      %476 = vmatprep.subr.mxu0 0.0
      %477 = vmatpush1.msra.mxu0 0.0
      %478 = vmatprep.subr.mxu0 0.0
      %479 = vmatpush1.msra.mxu0 0.0
      %480 = vmatprep.subr.mxu0 0.0
      %481 = vmatpush1.msra.mxu0 0.0
      %482 = vmatprep.subr.mxu0 0.0
      %483 = vmatpush1.msra.mxu0 0.0
      %484 = vmatprep.mubr.f32.mxu0 0.0
      %485 = vmatmul.mubr.f32.gmra.mrb[0].mxu0 %v412
      %v486 = vpop.f32.mrb[0].mxu0
      %v487 = vadd.f32 0.0, %v486
      %v488 = vpop.f32.mrb[0].mxu0
      %489 = vmatprep.mubr.f32.mxu0 0.0
      %490 = vmatmul.mubr.f32.gmra.mrb[0].mxu0 %v415
      %v491 = vpop.f32.mrb[0].mxu0
      %v492 = vadd.f32 0.0, %v491
      %v493 = vpop.f32.mrb[0].mxu0
      %494 = vdwg.mxu0
      %v495 = vadd.f32 %v399, %v487
      %v496 = vadd.f32 %v404, %v492
      %v497 = vld [vmem:[%s2] sm:$0x1]
      %v499 = vlaneseq
      %v500 = vshrl.u32 %v499, 7
      %v501 = vsub.s32 0, %v500
      %v502 = vrot.slane %v497, %v501
      %v504 = vadd.f32 %v495, %v502
      %v505 = vadd.f32 %v496, %v502
      %v506 = vxor.u32 %v504, 2147483648
      %v507 = vxor.u32 %v505, 2147483648
      %v508 = vmul.f32 %v506, 1.442695
      %v509 = vpow.pop %v508
      %v510 = vmul.f32 %v507, 1.442695
      %v511 = vpow.pop %v510
      %v512 = vadd.f32 %v509, 1.0
      %v513 = vadd.f32 %v511, 1.0
      %v514 = vrcp.pop %v512
      %v515 = vmul.f32 1.0, %v514
      %v516 = vrcp.pop %v513
      %v517 = vmul.f32 1.0, %v516
      %v518 = vmul.f32 %v504, %v515
      %v519 = vmul.f32 %v505, %v517
      %v520 = vadd.f32 %v518, %v227
      %v521 = vadd.f32 %v519, %v228
      %522 = vst.msk [vmem:[#allocation2 + $0x4] sm:$0xff] %vm223, %v520
      %523 = vst.msk [vmem:[#allocation2 + $0xc] sm:$0xff] %vm223, %v521
      %v524 = vld [vmem:[#allocation2 + $0x2] sm:$0xff]
      %v525 = vld [vmem:[#allocation2 + $0xa] sm:$0xff]
      %s526 = scalar_lea.vmem %s1, 12
      %v527 = vld [vmem:[%s526] sm:$0xf]
      %v528 = vld [vmem:[#allocation2 + $0x4] sm:$0xff]
      %v529 = vld [vmem:[#allocation2 + $0xc] sm:$0xff]
      %s530 = scalar_lea.vmem %s1, 16
      %v531 = vld [vmem:[%s530] sm:$0xf]
      %v533 = vsel %vm223, %v528, 0
      %v536 = vsel %vm223, %v529, 0
      %v539 = vsel %vm244, %v531, 0
      %541 = vmatprep.subr.mxu0 0.0
      %542 = vmatpush1.msra.mxu0 %v539
      %543 = vmatprep.subr.mxu0 0.0
      %544 = vmatpush1.msra.mxu0 0.0
      %545 = vmatprep.subr.mxu0 0.0
      %546 = vmatpush1.msra.mxu0 0.0
      %547 = vmatprep.subr.mxu0 0.0
      %548 = vmatpush1.msra.mxu0 0.0
      %549 = vmatprep.subr.mxu0 0.0
      %550 = vmatpush1.msra.mxu0 0.0
      %551 = vmatprep.subr.mxu0 0.0
      %552 = vmatpush1.msra.mxu0 0.0
      %553 = vmatprep.subr.mxu0 0.0
      %554 = vmatpush1.msra.mxu0 0.0
      %555 = vmatprep.subr.mxu0 0.0
      %556 = vmatpush1.msra.mxu0 0.0
      %557 = vmatprep.subr.mxu0 0.0
      %558 = vmatpush1.msra.mxu0 0.0
      %559 = vmatprep.subr.mxu0 0.0
      %560 = vmatpush1.msra.mxu0 0.0
      %561 = vmatprep.subr.mxu0 0.0
      %562 = vmatpush1.msra.mxu0 0.0
      %563 = vmatprep.subr.mxu0 0.0
      %564 = vmatpush1.msra.mxu0 0.0
      %565 = vmatprep.subr.mxu0 0.0
      %566 = vmatpush1.msra.mxu0 0.0
      %567 = vmatprep.subr.mxu0 0.0
      %568 = vmatpush1.msra.mxu0 0.0
      %569 = vmatprep.subr.mxu0 0.0
      %570 = vmatpush1.msra.mxu0 0.0
      %571 = vmatprep.subr.mxu0 0.0
      %572 = vmatpush1.msra.mxu0 0.0
      %573 = vmatprep.subr.mxu0 0.0
      %574 = vmatpush1.msra.mxu0 0.0
      %575 = vmatprep.subr.mxu0 0.0
      %576 = vmatpush1.msra.mxu0 0.0
      %577 = vmatprep.subr.mxu0 0.0
      %578 = vmatpush1.msra.mxu0 0.0
      %579 = vmatprep.subr.mxu0 0.0
      %580 = vmatpush1.msra.mxu0 0.0
      %581 = vmatprep.subr.mxu0 0.0
      %582 = vmatpush1.msra.mxu0 0.0
      %583 = vmatprep.subr.mxu0 0.0
      %584 = vmatpush1.msra.mxu0 0.0
      %585 = vmatprep.subr.mxu0 0.0
      %586 = vmatpush1.msra.mxu0 0.0
      %587 = vmatprep.subr.mxu0 0.0
      %588 = vmatpush1.msra.mxu0 0.0
      %589 = vmatprep.subr.mxu0 0.0
      %590 = vmatpush1.msra.mxu0 0.0
      %591 = vmatprep.subr.mxu0 0.0
      %592 = vmatpush1.msra.mxu0 0.0
      %593 = vmatprep.subr.mxu0 0.0
      %594 = vmatpush1.msra.mxu0 0.0
      %595 = vmatprep.subr.mxu0 0.0
      %596 = vmatpush1.msra.mxu0 0.0
      %597 = vmatprep.subr.mxu0 0.0
      %598 = vmatpush1.msra.mxu0 0.0
      %599 = vmatprep.subr.mxu0 0.0
      %600 = vmatpush1.msra.mxu0 0.0
      %601 = vmatprep.subr.mxu0 0.0
      %602 = vmatpush1.msra.mxu0 0.0
      %603 = vmatprep.subr.mxu0 0.0
      %604 = vmatpush1.msra.mxu0 0.0
      %605 = vmatprep.mubr.f32.mxu0 0.0
      %606 = vmatmul.mubr.f32.gmra.mrb[0].mxu0 %v533
      %v607 = vpop.f32.mrb[0].mxu0
      %v608 = vadd.f32 0.0, %v607
      %v609 = vpop.f32.mrb[0].mxu0
      %610 = vmatprep.mubr.f32.mxu0 0.0
      %611 = vmatmul.mubr.f32.gmra.mrb[0].mxu0 %v536
      %v612 = vpop.f32.mrb[0].mxu0
      %v613 = vadd.f32 0.0, %v612
      %v614 = vpop.f32.mrb[0].mxu0
      %615 = vdwg.mxu0
      %v617 = vsel %vm223, %v524, 0
      %v620 = vsel %vm223, %v525, 0
      %v623 = vsel %vm244, %v527, 0
      %625 = vmatprep.subr.mxu0 0.0
      %626 = vmatpush1.msra.mxu0 %v623
      %627 = vmatprep.subr.mxu0 0.0
      %628 = vmatpush1.msra.mxu0 0.0
      %629 = vmatprep.subr.mxu0 0.0
      %630 = vmatpush1.msra.mxu0 0.0
      %631 = vmatprep.subr.mxu0 0.0
      %632 = vmatpush1.msra.mxu0 0.0
      %633 = vmatprep.subr.mxu0 0.0
      %634 = vmatpush1.msra.mxu0 0.0
      %635 = vmatprep.subr.mxu0 0.0
      %636 = vmatpush1.msra.mxu0 0.0
      %637 = vmatprep.subr.mxu0 0.0
      %638 = vmatpush1.msra.mxu0 0.0
      %639 = vmatprep.subr.mxu0 0.0
      %640 = vmatpush1.msra.mxu0 0.0
      %641 = vmatprep.subr.mxu0 0.0
      %642 = vmatpush1.msra.mxu0 0.0
      %643 = vmatprep.subr.mxu0 0.0
      %644 = vmatpush1.msra.mxu0 0.0
      %645 = vmatprep.subr.mxu0 0.0
      %646 = vmatpush1.msra.mxu0 0.0
      %647 = vmatprep.subr.mxu0 0.0
      %648 = vmatpush1.msra.mxu0 0.0
      %649 = vmatprep.subr.mxu0 0.0
      %650 = vmatpush1.msra.mxu0 0.0
      %651 = vmatprep.subr.mxu0 0.0
      %652 = vmatpush1.msra.mxu0 0.0
      %653 = vmatprep.subr.mxu0 0.0
      %654 = vmatpush1.msra.mxu0 0.0
      %655 = vmatprep.subr.mxu0 0.0
      %656 = vmatpush1.msra.mxu0 0.0
      %657 = vmatprep.subr.mxu0 0.0
      %658 = vmatpush1.msra.mxu0 0.0
      %659 = vmatprep.subr.mxu0 0.0
      %660 = vmatpush1.msra.mxu0 0.0
      %661 = vmatprep.subr.mxu0 0.0
      %662 = vmatpush1.msra.mxu0 0.0
      %663 = vmatprep.subr.mxu0 0.0
      %664 = vmatpush1.msra.mxu0 0.0
      %665 = vmatprep.subr.mxu0 0.0
      %666 = vmatpush1.msra.mxu0 0.0
      %667 = vmatprep.subr.mxu0 0.0
      %668 = vmatpush1.msra.mxu0 0.0
      %669 = vmatprep.subr.mxu0 0.0
      %670 = vmatpush1.msra.mxu0 0.0
      %671 = vmatprep.subr.mxu0 0.0
      %672 = vmatpush1.msra.mxu0 0.0
      %673 = vmatprep.subr.mxu0 0.0
      %674 = vmatpush1.msra.mxu0 0.0
      %675 = vmatprep.subr.mxu0 0.0
      %676 = vmatpush1.msra.mxu0 0.0
      %677 = vmatprep.subr.mxu0 0.0
      %678 = vmatpush1.msra.mxu0 0.0
      %679 = vmatprep.subr.mxu0 0.0
      %680 = vmatpush1.msra.mxu0 0.0
      %681 = vmatprep.subr.mxu0 0.0
      %682 = vmatpush1.msra.mxu0 0.0
      %683 = vmatprep.subr.mxu0 0.0
      %684 = vmatpush1.msra.mxu0 0.0
      %685 = vmatprep.subr.mxu0 0.0
      %686 = vmatpush1.msra.mxu0 0.0
      %687 = vmatprep.subr.mxu0 0.0
      %688 = vmatpush1.msra.mxu0 0.0
      %689 = vmatprep.mubr.f32.mxu0 0.0
      %690 = vmatmul.mubr.f32.gmra.mrb[0].mxu0 %v617
      %v691 = vpop.f32.mrb[0].mxu0
      %v692 = vadd.f32 %v608, %v691
      %v693 = vpop.f32.mrb[0].mxu0
      %694 = vmatprep.mubr.f32.mxu0 0.0
      %695 = vmatmul.mubr.f32.gmra.mrb[0].mxu0 %v620
      %v696 = vpop.f32.mrb[0].mxu0
      %v697 = vadd.f32 %v613, %v696
      %v698 = vpop.f32.mrb[0].mxu0
      %699 = vdwg.mxu0
      %v700 = vld [vmem:[#allocation2 + $0x6] sm:$0xff]
      %v701 = vld [vmem:[#allocation2 + $0xe] sm:$0xff]
      %s702 = scalar_lea.vmem %s1, 20
      %v703 = vld [vmem:[%s702] sm:$0xf]
      %v705 = vsel %vm223, %v700, 0
      %v708 = vsel %vm223, %v701, 0
      %v711 = vsel %vm244, %v703, 0
      %713 = vmatprep.subr.mxu0 0.0
      %714 = vmatpush1.msra.mxu0 %v711
      %715 = vmatprep.subr.mxu0 0.0
      %716 = vmatpush1.msra.mxu0 0.0
      %717 = vmatprep.subr.mxu0 0.0
      %718 = vmatpush1.msra.mxu0 0.0
      %719 = vmatprep.subr.mxu0 0.0
      %720 = vmatpush1.msra.mxu0 0.0
      %721 = vmatprep.subr.mxu0 0.0
      %722 = vmatpush1.msra.mxu0 0.0
      %723 = vmatprep.subr.mxu0 0.0
      %724 = vmatpush1.msra.mxu0 0.0
      %725 = vmatprep.subr.mxu0 0.0
      %726 = vmatpush1.msra.mxu0 0.0
      %727 = vmatprep.subr.mxu0 0.0
      %728 = vmatpush1.msra.mxu0 0.0
      %729 = vmatprep.subr.mxu0 0.0
      %730 = vmatpush1.msra.mxu0 0.0
      %731 = vmatprep.subr.mxu0 0.0
      %732 = vmatpush1.msra.mxu0 0.0
      %733 = vmatprep.subr.mxu0 0.0
      %734 = vmatpush1.msra.mxu0 0.0
      %735 = vmatprep.subr.mxu0 0.0
      %736 = vmatpush1.msra.mxu0 0.0
      %737 = vmatprep.subr.mxu0 0.0
      %738 = vmatpush1.msra.mxu0 0.0
      %739 = vmatprep.subr.mxu0 0.0
      %740 = vmatpush1.msra.mxu0 0.0
      %741 = vmatprep.subr.mxu0 0.0
      %742 = vmatpush1.msra.mxu0 0.0
      %743 = vmatprep.subr.mxu0 0.0
      %744 = vmatpush1.msra.mxu0 0.0
      %745 = vmatprep.subr.mxu0 0.0
      %746 = vmatpush1.msra.mxu0 0.0
      %747 = vmatprep.subr.mxu0 0.0
      %748 = vmatpush1.msra.mxu0 0.0
      %749 = vmatprep.subr.mxu0 0.0
      %750 = vmatpush1.msra.mxu0 0.0
      %751 = vmatprep.subr.mxu0 0.0
      %752 = vmatpush1.msra.mxu0 0.0
      %753 = vmatprep.subr.mxu0 0.0
      %754 = vmatpush1.msra.mxu0 0.0
      %755 = vmatprep.subr.mxu0 0.0
      %756 = vmatpush1.msra.mxu0 0.0
      %757 = vmatprep.subr.mxu0 0.0
      %758 = vmatpush1.msra.mxu0 0.0
      %759 = vmatprep.subr.mxu0 0.0
      %760 = vmatpush1.msra.mxu0 0.0
      %761 = vmatprep.subr.mxu0 0.0
      %762 = vmatpush1.msra.mxu0 0.0
      %763 = vmatprep.subr.mxu0 0.0
      %764 = vmatpush1.msra.mxu0 0.0
      %765 = vmatprep.subr.mxu0 0.0
      %766 = vmatpush1.msra.mxu0 0.0
      %767 = vmatprep.subr.mxu0 0.0
      %768 = vmatpush1.msra.mxu0 0.0
      %769 = vmatprep.subr.mxu0 0.0
      %770 = vmatpush1.msra.mxu0 0.0
      %771 = vmatprep.subr.mxu0 0.0
      %772 = vmatpush1.msra.mxu0 0.0
      %773 = vmatprep.subr.mxu0 0.0
      %774 = vmatpush1.msra.mxu0 0.0
      %775 = vmatprep.subr.mxu0 0.0
      %776 = vmatpush1.msra.mxu0 0.0
      %777 = vmatprep.mubr.f32.mxu0 0.0
      %778 = vmatmul.mubr.f32.gmra.mrb[0].mxu0 %v705
      %v779 = vpop.f32.mrb[0].mxu0
      %v780 = vadd.f32 0.0, %v779
      %v781 = vpop.f32.mrb[0].mxu0
      %782 = vmatprep.mubr.f32.mxu0 0.0
      %783 = vmatmul.mubr.f32.gmra.mrb[0].mxu0 %v708
      %v784 = vpop.f32.mrb[0].mxu0
      %v785 = vadd.f32 0.0, %v784
      %v786 = vpop.f32.mrb[0].mxu0
      %787 = vdwg.mxu0
      %v788 = vadd.f32 %v692, %v780
      %v789 = vadd.f32 %v697, %v785
      %s790 = scalar_lea.vmem %s2, 1
      %v791 = vld [vmem:[%s790] sm:$0x1]
      %v793 = vlaneseq
      %v794 = vshrl.u32 %v793, 7
      %v795 = vsub.s32 0, %v794
      %v796 = vrot.slane %v791, %v795
      %v798 = vadd.f32 %v788, %v796
      %v799 = vadd.f32 %v789, %v796
      %v800 = vxor.u32 %v798, 2147483648
      %v801 = vxor.u32 %v799, 2147483648
      %v802 = vmul.f32 %v800, 1.442695
      %v803 = vpow.pop %v802
      %v804 = vmul.f32 %v801, 1.442695
      %v805 = vpow.pop %v804
      %v806 = vadd.f32 %v803, 1.0
      %v807 = vadd.f32 %v805, 1.0
      %v808 = vrcp.pop %v806
      %v809 = vmul.f32 1.0, %v808
      %v810 = vrcp.pop %v807
      %v811 = vmul.f32 1.0, %v810
      %v812 = vmul.f32 %v798, %v809
      %v813 = vmul.f32 %v799, %v811
      %v814 = vadd.f32 %v812, %v520
      %v815 = vadd.f32 %v813, %v521
      %816 = vst.msk [vmem:[#allocation2 + $0x4] sm:$0xff] %vm223, %v814
      %817 = vst.msk [vmem:[#allocation2 + $0xc] sm:$0xff] %vm223, %v815
      %v818 = vld [vmem:[#allocation2] sm:$0xff]
      %v819 = vld [vmem:[#allocation2 + $0x8] sm:$0xff]
      %s820 = scalar_lea.vmem %s1, 24
      %v821 = vld [vmem:[%s820] sm:$0xf]
      %v822 = vld [vmem:[#allocation2 + $0x4] sm:$0xff]
      %v823 = vld [vmem:[#allocation2 + $0xc] sm:$0xff]
      %s824 = scalar_lea.vmem %s1, 28
      %v825 = vld [vmem:[%s824] sm:$0xf]
      %v827 = vsel %vm223, %v822, 0
      %v830 = vsel %vm223, %v823, 0
      %v833 = vsel %vm244, %v825, 0
      %835 = vmatprep.subr.mxu0 0.0
      %836 = vmatpush1.msra.mxu0 %v833
      %837 = vmatprep.subr.mxu0 0.0
      %838 = vmatpush1.msra.mxu0 0.0
      %839 = vmatprep.subr.mxu0 0.0
      %840 = vmatpush1.msra.mxu0 0.0
      %841 = vmatprep.subr.mxu0 0.0
      %842 = vmatpush1.msra.mxu0 0.0
      %843 = vmatprep.subr.mxu0 0.0
      %844 = vmatpush1.msra.mxu0 0.0
      %845 = vmatprep.subr.mxu0 0.0
      %846 = vmatpush1.msra.mxu0 0.0
      %847 = vmatprep.subr.mxu0 0.0
      %848 = vmatpush1.msra.mxu0 0.0
      %849 = vmatprep.subr.mxu0 0.0
      %850 = vmatpush1.msra.mxu0 0.0
      %851 = vmatprep.subr.mxu0 0.0
      %852 = vmatpush1.msra.mxu0 0.0
      %853 = vmatprep.subr.mxu0 0.0
      %854 = vmatpush1.msra.mxu0 0.0
      %855 = vmatprep.subr.mxu0 0.0
      %856 = vmatpush1.msra.mxu0 0.0
      %857 = vmatprep.subr.mxu0 0.0
      %858 = vmatpush1.msra.mxu0 0.0
      %859 = vmatprep.subr.mxu0 0.0
      %860 = vmatpush1.msra.mxu0 0.0
      %861 = vmatprep.subr.mxu0 0.0
      %862 = vmatpush1.msra.mxu0 0.0
      %863 = vmatprep.subr.mxu0 0.0
      %864 = vmatpush1.msra.mxu0 0.0
      %865 = vmatprep.subr.mxu0 0.0
      %866 = vmatpush1.msra.mxu0 0.0
      %867 = vmatprep.subr.mxu0 0.0
      %868 = vmatpush1.msra.mxu0 0.0
      %869 = vmatprep.subr.mxu0 0.0
      %870 = vmatpush1.msra.mxu0 0.0
      %871 = vmatprep.subr.mxu0 0.0
      %872 = vmatpush1.msra.mxu0 0.0
      %873 = vmatprep.subr.mxu0 0.0
      %874 = vmatpush1.msra.mxu0 0.0
      %875 = vmatprep.subr.mxu0 0.0
      %876 = vmatpush1.msra.mxu0 0.0
      %877 = vmatprep.subr.mxu0 0.0
      %878 = vmatpush1.msra.mxu0 0.0
      %879 = vmatprep.subr.mxu0 0.0
      %880 = vmatpush1.msra.mxu0 0.0
      %881 = vmatprep.subr.mxu0 0.0
      %882 = vmatpush1.msra.mxu0 0.0
      %883 = vmatprep.subr.mxu0 0.0
      %884 = vmatpush1.msra.mxu0 0.0
      %885 = vmatprep.subr.mxu0 0.0
      %886 = vmatpush1.msra.mxu0 0.0
      %887 = vmatprep.subr.mxu0 0.0
      %888 = vmatpush1.msra.mxu0 0.0
      %889 = vmatprep.subr.mxu0 0.0
      %890 = vmatpush1.msra.mxu0 0.0
      %891 = vmatprep.subr.mxu0 0.0
      %892 = vmatpush1.msra.mxu0 0.0
      %893 = vmatprep.subr.mxu0 0.0
      %894 = vmatpush1.msra.mxu0 0.0
      %895 = vmatprep.subr.mxu0 0.0
      %896 = vmatpush1.msra.mxu0 0.0
      %897 = vmatprep.subr.mxu0 0.0
      %898 = vmatpush1.msra.mxu0 0.0
      %899 = vmatprep.mubr.f32.mxu0 0.0
      %900 = vmatmul.mubr.f32.gmra.mrb[0].mxu0 %v827
      %v901 = vpop.f32.mrb[0].mxu0
      %v902 = vadd.f32 0.0, %v901
      %v903 = vpop.f32.mrb[0].mxu0
      %904 = vmatprep.mubr.f32.mxu0 0.0
      %905 = vmatmul.mubr.f32.gmra.mrb[0].mxu0 %v830
      %v906 = vpop.f32.mrb[0].mxu0
      %v907 = vadd.f32 0.0, %v906
      %v908 = vpop.f32.mrb[0].mxu0
      %909 = vdwg.mxu0
      %v911 = vsel %vm223, %v818, 0
      %v914 = vsel %vm223, %v819, 0
      %v917 = vsel %vm244, %v821, 0
      %919 = vmatprep.subr.mxu0 0.0
      %920 = vmatpush1.msra.mxu0 %v917
      %921 = vmatprep.subr.mxu0 0.0
      %922 = vmatpush1.msra.mxu0 0.0
      %923 = vmatprep.subr.mxu0 0.0
      %924 = vmatpush1.msra.mxu0 0.0
      %925 = vmatprep.subr.mxu0 0.0
      %926 = vmatpush1.msra.mxu0 0.0
      %927 = vmatprep.subr.mxu0 0.0
      %928 = vmatpush1.msra.mxu0 0.0
      %929 = vmatprep.subr.mxu0 0.0
      %930 = vmatpush1.msra.mxu0 0.0
      %931 = vmatprep.subr.mxu0 0.0
      %932 = vmatpush1.msra.mxu0 0.0
      %933 = vmatprep.subr.mxu0 0.0
      %934 = vmatpush1.msra.mxu0 0.0
      %935 = vmatprep.subr.mxu0 0.0
      %936 = vmatpush1.msra.mxu0 0.0
      %937 = vmatprep.subr.mxu0 0.0
      %938 = vmatpush1.msra.mxu0 0.0
      %939 = vmatprep.subr.mxu0 0.0
      %940 = vmatpush1.msra.mxu0 0.0
      %941 = vmatprep.subr.mxu0 0.0
      %942 = vmatpush1.msra.mxu0 0.0
      %943 = vmatprep.subr.mxu0 0.0
      %944 = vmatpush1.msra.mxu0 0.0
      %945 = vmatprep.subr.mxu0 0.0
      %946 = vmatpush1.msra.mxu0 0.0
      %947 = vmatprep.subr.mxu0 0.0
      %948 = vmatpush1.msra.mxu0 0.0
      %949 = vmatprep.subr.mxu0 0.0
      %950 = vmatpush1.msra.mxu0 0.0
      %951 = vmatprep.subr.mxu0 0.0
      %952 = vmatpush1.msra.mxu0 0.0
      %953 = vmatprep.subr.mxu0 0.0
      %954 = vmatpush1.msra.mxu0 0.0
      %955 = vmatprep.subr.mxu0 0.0
      %956 = vmatpush1.msra.mxu0 0.0
      %957 = vmatprep.subr.mxu0 0.0
      %958 = vmatpush1.msra.mxu0 0.0
      %959 = vmatprep.subr.mxu0 0.0
      %960 = vmatpush1.msra.mxu0 0.0
      %961 = vmatprep.subr.mxu0 0.0
      %962 = vmatpush1.msra.mxu0 0.0
      %963 = vmatprep.subr.mxu0 0.0
      %964 = vmatpush1.msra.mxu0 0.0
      %965 = vmatprep.subr.mxu0 0.0
      %966 = vmatpush1.msra.mxu0 0.0
      %967 = vmatprep.subr.mxu0 0.0
      %968 = vmatpush1.msra.mxu0 0.0
      %969 = vmatprep.subr.mxu0 0.0
      %970 = vmatpush1.msra.mxu0 0.0
      %971 = vmatprep.subr.mxu0 0.0
      %972 = vmatpush1.msra.mxu0 0.0
      %973 = vmatprep.subr.mxu0 0.0
      %974 = vmatpush1.msra.mxu0 0.0
      %975 = vmatprep.subr.mxu0 0.0
      %976 = vmatpush1.msra.mxu0 0.0
      %977 = vmatprep.subr.mxu0 0.0
      %978 = vmatpush1.msra.mxu0 0.0
      %979 = vmatprep.subr.mxu0 0.0
      %980 = vmatpush1.msra.mxu0 0.0
      %981 = vmatprep.subr.mxu0 0.0
      %982 = vmatpush1.msra.mxu0 0.0
      %983 = vmatprep.mubr.f32.mxu0 0.0
      %984 = vmatmul.mubr.f32.gmra.mrb[0].mxu0 %v911
      %v985 = vpop.f32.mrb[0].mxu0
      %v986 = vadd.f32 %v902, %v985
      %v987 = vpop.f32.mrb[0].mxu0
      %988 = vmatprep.mubr.f32.mxu0 0.0
      %989 = vmatmul.mubr.f32.gmra.mrb[0].mxu0 %v914
      %v990 = vpop.f32.mrb[0].mxu0
      %v991 = vadd.f32 %v907, %v990
      %v992 = vpop.f32.mrb[0].mxu0
      %993 = vdwg.mxu0
      %v994 = vld [vmem:[#allocation2 + $0x8] sm:$0xff]
      %v995 = vld [vmem:[#allocation2 + $0x10] sm:$0xff]
      %s996 = scalar_lea.vmem %s1, 32
      %v997 = vld [vmem:[%s996] sm:$0xf]
      %v999 = vsel %vm223, %v994, 0
      %v1002 = vsel %vm223, %v995, 0
      %v1005 = vsel %vm244, %v997, 0
      %1007 = vmatprep.subr.mxu0 0.0
      %1008 = vmatpush1.msra.mxu0 %v1005
      %1009 = vmatprep.subr.mxu0 0.0
      %1010 = vmatpush1.msra.mxu0 0.0
      %1011 = vmatprep.subr.mxu0 0.0
      %1012 = vmatpush1.msra.mxu0 0.0
      %1013 = vmatprep.subr.mxu0 0.0
      %1014 = vmatpush1.msra.mxu0 0.0
      %1015 = vmatprep.subr.mxu0 0.0
      %1016 = vmatpush1.msra.mxu0 0.0
      %1017 = vmatprep.subr.mxu0 0.0
      %1018 = vmatpush1.msra.mxu0 0.0
      %1019 = vmatprep.subr.mxu0 0.0
      %1020 = vmatpush1.msra.mxu0 0.0
      %1021 = vmatprep.subr.mxu0 0.0
      %1022 = vmatpush1.msra.mxu0 0.0
      %1023 = vmatprep.subr.mxu0 0.0
      %1024 = vmatpush1.msra.mxu0 0.0
      %1025 = vmatprep.subr.mxu0 0.0
      %1026 = vmatpush1.msra.mxu0 0.0
      %1027 = vmatprep.subr.mxu0 0.0
      %1028 = vmatpush1.msra.mxu0 0.0
      %1029 = vmatprep.subr.mxu0 0.0
      %1030 = vmatpush1.msra.mxu0 0.0
      %1031 = vmatprep.subr.mxu0 0.0
      %1032 = vmatpush1.msra.mxu0 0.0
      %1033 = vmatprep.subr.mxu0 0.0
      %1034 = vmatpush1.msra.mxu0 0.0
      %1035 = vmatprep.subr.mxu0 0.0
      %1036 = vmatpush1.msra.mxu0 0.0
      %1037 = vmatprep.subr.mxu0 0.0
      %1038 = vmatpush1.msra.mxu0 0.0
      %1039 = vmatprep.subr.mxu0 0.0
      %1040 = vmatpush1.msra.mxu0 0.0
      %1041 = vmatprep.subr.mxu0 0.0
      %1042 = vmatpush1.msra.mxu0 0.0
      %1043 = vmatprep.subr.mxu0 0.0
      %1044 = vmatpush1.msra.mxu0 0.0
      %1045 = vmatprep.subr.mxu0 0.0
      %1046 = vmatpush1.msra.mxu0 0.0
      %1047 = vmatprep.subr.mxu0 0.0
      %1048 = vmatpush1.msra.mxu0 0.0
      %1049 = vmatprep.subr.mxu0 0.0
      %1050 = vmatpush1.msra.mxu0 0.0
      %1051 = vmatprep.subr.mxu0 0.0
      %1052 = vmatpush1.msra.mxu0 0.0
      %1053 = vmatprep.subr.mxu0 0.0
      %1054 = vmatpush1.msra.mxu0 0.0
      %1055 = vmatprep.subr.mxu0 0.0
      %1056 = vmatpush1.msra.mxu0 0.0
      %1057 = vmatprep.subr.mxu0 0.0
      %1058 = vmatpush1.msra.mxu0 0.0
      %1059 = vmatprep.subr.mxu0 0.0
      %1060 = vmatpush1.msra.mxu0 0.0
      %1061 = vmatprep.subr.mxu0 0.0
      %1062 = vmatpush1.msra.mxu0 0.0
      %1063 = vmatprep.subr.mxu0 0.0
      %1064 = vmatpush1.msra.mxu0 0.0
      %1065 = vmatprep.subr.mxu0 0.0
      %1066 = vmatpush1.msra.mxu0 0.0
      %1067 = vmatprep.subr.mxu0 0.0
      %1068 = vmatpush1.msra.mxu0 0.0
      %1069 = vmatprep.subr.mxu0 0.0
      %1070 = vmatpush1.msra.mxu0 0.0
      %1071 = vmatprep.mubr.f32.mxu0 0.0
      %1072 = vmatmul.mubr.f32.gmra.mrb[0].mxu0 %v999
      %v1073 = vpop.f32.mrb[0].mxu0
      %v1074 = vadd.f32 0.0, %v1073
      %v1075 = vpop.f32.mrb[0].mxu0
      %1076 = vmatprep.mubr.f32.mxu0 0.0
      %1077 = vmatmul.mubr.f32.gmra.mrb[0].mxu0 %v1002
      %v1078 = vpop.f32.mrb[0].mxu0
      %v1079 = vadd.f32 0.0, %v1078
      %v1080 = vpop.f32.mrb[0].mxu0
      %1081 = vdwg.mxu0
      %v1082 = vadd.f32 %v986, %v1074
      %v1083 = vadd.f32 %v991, %v1079
      %s1084 = scalar_lea.vmem %s2, 2
      %v1085 = vld [vmem:[%s1084] sm:$0x1]
      %v1087 = vlaneseq
      %v1088 = vshrl.u32 %v1087, 7
      %v1089 = vsub.s32 0, %v1088
      %v1090 = vrot.slane %v1085, %v1089
      %v1092 = vadd.f32 %v1082, %v1090
      %v1093 = vadd.f32 %v1083, %v1090
      %v1094 = vxor.u32 %v1092, 2147483648
      %v1095 = vxor.u32 %v1093, 2147483648
      %v1096 = vmul.f32 %v1094, 1.442695
      %v1097 = vpow.pop %v1096
      %v1098 = vmul.f32 %v1095, 1.442695
      %v1099 = vpow.pop %v1098
      %v1100 = vadd.f32 %v1097, 1.0
      %v1101 = vadd.f32 %v1099, 1.0
      %v1102 = vrcp.pop %v1100
      %v1103 = vmul.f32 1.0, %v1102
      %v1104 = vrcp.pop %v1101
      %v1105 = vmul.f32 1.0, %v1104
      %v1106 = vmul.f32 %v1092, %v1103
      %v1107 = vmul.f32 %v1093, %v1105
      %v1108 = vadd.f32 %v1106, %v814
      %v1109 = vadd.f32 %v1107, %v815
      %1110 = vst.msk [vmem:[#allocation2 + $0x4] sm:$0xff] %vm223, %v1108
      %1111 = vst.msk [vmem:[#allocation2 + $0xc] sm:$0xff] %vm223, %v1109
      %s1112 = scalar_lea.vmem [#allocation2], 3
      %v1113 = vld [vmem:[%s1112] ss:$2 sm:$0xff]
      %v1114 = vld [vmem:[%s3] sm:$0xf]
      %s1115 = scalar_lea.vmem [#allocation2], 4
      %v1116 = vld [vmem:[%s1115] ss:$2 sm:$0xff]
      %s1117 = scalar_lea.vmem %s3, 4
      %v1118 = vld [vmem:[%s1117] sm:$0xf]
      %v1120 = vsel %vm223, %v1116, 0
      %v1123 = vsel %vm244, %v1118, 0
      %1125 = vmatprep.subr.mxu0 0.0
      %1126 = vmatpush1.msra.mxu0 %v1123
      %1127 = vmatprep.subr.mxu0 0.0
      %1128 = vmatpush1.msra.mxu0 0.0
      %1129 = vmatprep.subr.mxu0 0.0
      %1130 = vmatpush1.msra.mxu0 0.0
      %1131 = vmatprep.subr.mxu0 0.0
      %1132 = vmatpush1.msra.mxu0 0.0
      %1133 = vmatprep.subr.mxu0 0.0
      %1134 = vmatpush1.msra.mxu0 0.0
      %1135 = vmatprep.subr.mxu0 0.0
      %1136 = vmatpush1.msra.mxu0 0.0
      %1137 = vmatprep.subr.mxu0 0.0
      %1138 = vmatpush1.msra.mxu0 0.0
      %1139 = vmatprep.subr.mxu0 0.0
      %1140 = vmatpush1.msra.mxu0 0.0
      %1141 = vmatprep.subr.mxu0 0.0
      %1142 = vmatpush1.msra.mxu0 0.0
      %1143 = vmatprep.subr.mxu0 0.0
      %1144 = vmatpush1.msra.mxu0 0.0
      %1145 = vmatprep.subr.mxu0 0.0
      %1146 = vmatpush1.msra.mxu0 0.0
      %1147 = vmatprep.subr.mxu0 0.0
      %1148 = vmatpush1.msra.mxu0 0.0
      %1149 = vmatprep.subr.mxu0 0.0
      %1150 = vmatpush1.msra.mxu0 0.0
      %1151 = vmatprep.subr.mxu0 0.0
      %1152 = vmatpush1.msra.mxu0 0.0
      %1153 = vmatprep.subr.mxu0 0.0
      %1154 = vmatpush1.msra.mxu0 0.0
      %1155 = vmatprep.subr.mxu0 0.0
      %1156 = vmatpush1.msra.mxu0 0.0
      %1157 = vmatprep.subr.mxu0 0.0
      %1158 = vmatpush1.msra.mxu0 0.0
      %1159 = vmatprep.subr.mxu0 0.0
      %1160 = vmatpush1.msra.mxu0 0.0
      %1161 = vmatprep.subr.mxu0 0.0
      %1162 = vmatpush1.msra.mxu0 0.0
      %1163 = vmatprep.subr.mxu0 0.0
      %1164 = vmatpush1.msra.mxu0 0.0
      %1165 = vmatprep.subr.mxu0 0.0
      %1166 = vmatpush1.msra.mxu0 0.0
      %1167 = vmatprep.subr.mxu0 0.0
      %1168 = vmatpush1.msra.mxu0 0.0
      %1169 = vmatprep.subr.mxu0 0.0
      %1170 = vmatpush1.msra.mxu0 0.0
      %1171 = vmatprep.subr.mxu0 0.0
      %1172 = vmatpush1.msra.mxu0 0.0
      %1173 = vmatprep.subr.mxu0 0.0
      %1174 = vmatpush1.msra.mxu0 0.0
      %1175 = vmatprep.subr.mxu0 0.0
      %1176 = vmatpush1.msra.mxu0 0.0
      %1177 = vmatprep.subr.mxu0 0.0
      %1178 = vmatpush1.msra.mxu0 0.0
      %1179 = vmatprep.subr.mxu0 0.0
      %1180 = vmatpush1.msra.mxu0 0.0
      %1181 = vmatprep.subr.mxu0 0.0
      %1182 = vmatpush1.msra.mxu0 0.0
      %1183 = vmatprep.subr.mxu0 0.0
      %1184 = vmatpush1.msra.mxu0 0.0
      %1185 = vmatprep.subr.mxu0 0.0
      %1186 = vmatpush1.msra.mxu0 0.0
      %1187 = vmatprep.subr.mxu0 0.0
      %1188 = vmatpush1.msra.mxu0 0.0
      %1189 = vmatprep.mubr.f32.mxu0 0.0
      %1190 = vmatmul.mubr.f32.gmra.mrb[0].mxu0 %v1120
      %v1191 = vpop.f32.mrb[0].mxu0
      %v1192 = vadd.f32 0.0, %v1191
      %v1193 = vpop.f32.mrb[0].mxu0
      %1194 = vdwg.mxu0
      %v1196 = vsel %vm223, %v1113, 0
      %v1199 = vsel %vm244, %v1114, 0
      %1201 = vmatprep.subr.mxu0 0.0
      %1202 = vmatpush1.msra.mxu0 %v1199
      %1203 = vmatprep.subr.mxu0 0.0
      %1204 = vmatpush1.msra.mxu0 0.0
      %1205 = vmatprep.subr.mxu0 0.0
      %1206 = vmatpush1.msra.mxu0 0.0
      %1207 = vmatprep.subr.mxu0 0.0
      %1208 = vmatpush1.msra.mxu0 0.0
      %1209 = vmatprep.subr.mxu0 0.0
      %1210 = vmatpush1.msra.mxu0 0.0
      %1211 = vmatprep.subr.mxu0 0.0
      %1212 = vmatpush1.msra.mxu0 0.0
      %1213 = vmatprep.subr.mxu0 0.0
      %1214 = vmatpush1.msra.mxu0 0.0
      %1215 = vmatprep.subr.mxu0 0.0
      %1216 = vmatpush1.msra.mxu0 0.0
      %1217 = vmatprep.subr.mxu0 0.0
      %1218 = vmatpush1.msra.mxu0 0.0
      %1219 = vmatprep.subr.mxu0 0.0
      %1220 = vmatpush1.msra.mxu0 0.0
      %1221 = vmatprep.subr.mxu0 0.0
      %1222 = vmatpush1.msra.mxu0 0.0
      %1223 = vmatprep.subr.mxu0 0.0
      %1224 = vmatpush1.msra.mxu0 0.0
      %1225 = vmatprep.subr.mxu0 0.0
      %1226 = vmatpush1.msra.mxu0 0.0
      %1227 = vmatprep.subr.mxu0 0.0
      %1228 = vmatpush1.msra.mxu0 0.0
      %1229 = vmatprep.subr.mxu0 0.0
      %1230 = vmatpush1.msra.mxu0 0.0
      %1231 = vmatprep.subr.mxu0 0.0
      %1232 = vmatpush1.msra.mxu0 0.0
      %1233 = vmatprep.subr.mxu0 0.0
      %1234 = vmatpush1.msra.mxu0 0.0
      %1235 = vmatprep.subr.mxu0 0.0
      %1236 = vmatpush1.msra.mxu0 0.0
      %1237 = vmatprep.subr.mxu0 0.0
      %1238 = vmatpush1.msra.mxu0 0.0
      %1239 = vmatprep.subr.mxu0 0.0
      %1240 = vmatpush1.msra.mxu0 0.0
      %1241 = vmatprep.subr.mxu0 0.0
      %1242 = vmatpush1.msra.mxu0 0.0
      %1243 = vmatprep.subr.mxu0 0.0
      %1244 = vmatpush1.msra.mxu0 0.0
      %1245 = vmatprep.subr.mxu0 0.0
      %1246 = vmatpush1.msra.mxu0 0.0
      %1247 = vmatprep.subr.mxu0 0.0
      %1248 = vmatpush1.msra.mxu0 0.0
      %1249 = vmatprep.subr.mxu0 0.0
      %1250 = vmatpush1.msra.mxu0 0.0
      %1251 = vmatprep.subr.mxu0 0.0
      %1252 = vmatpush1.msra.mxu0 0.0
      %1253 = vmatprep.subr.mxu0 0.0
      %1254 = vmatpush1.msra.mxu0 0.0
      %1255 = vmatprep.subr.mxu0 0.0
      %1256 = vmatpush1.msra.mxu0 0.0
      %1257 = vmatprep.subr.mxu0 0.0
      %1258 = vmatpush1.msra.mxu0 0.0
      %1259 = vmatprep.subr.mxu0 0.0
      %1260 = vmatpush1.msra.mxu0 0.0
      %1261 = vmatprep.subr.mxu0 0.0
      %1262 = vmatpush1.msra.mxu0 0.0
      %1263 = vmatprep.subr.mxu0 0.0
      %1264 = vmatpush1.msra.mxu0 0.0
      %1265 = vmatprep.mubr.f32.mxu0 0.0
      %1266 = vmatmul.mubr.f32.gmra.mrb[0].mxu0 %v1196
      %v1267 = vpop.f32.mrb[0].mxu0
      %v1268 = vadd.f32 %v1192, %v1267
      %v1269 = vpop.f32.mrb[0].mxu0
      %1270 = vdwg.mxu0
      %s1271 = scalar_lea.vmem [#allocation2], 5
      %v1272 = vld [vmem:[%s1271] ss:$2 sm:$0xff]
      %s1273 = scalar_lea.vmem %s3, 8
      %v1274 = vld [vmem:[%s1273] sm:$0xf]
      %v1276 = vsel %vm223, %v1272, 0
      %v1279 = vsel %vm244, %v1274, 0
      %1281 = vmatprep.subr.mxu0 0.0
      %1282 = vmatpush1.msra.mxu0 %v1279
      %1283 = vmatprep.subr.mxu0 0.0
      %1284 = vmatpush1.msra.mxu0 0.0
      %1285 = vmatprep.subr.mxu0 0.0
      %1286 = vmatpush1.msra.mxu0 0.0
      %1287 = vmatprep.subr.mxu0 0.0
      %1288 = vmatpush1.msra.mxu0 0.0
      %1289 = vmatprep.subr.mxu0 0.0
      %1290 = vmatpush1.msra.mxu0 0.0
      %1291 = vmatprep.subr.mxu0 0.0
      %1292 = vmatpush1.msra.mxu0 0.0
      %1293 = vmatprep.subr.mxu0 0.0
      %1294 = vmatpush1.msra.mxu0 0.0
      %1295 = vmatprep.subr.mxu0 0.0
      %1296 = vmatpush1.msra.mxu0 0.0
      %1297 = vmatprep.subr.mxu0 0.0
      %1298 = vmatpush1.msra.mxu0 0.0
      %1299 = vmatprep.subr.mxu0 0.0
      %1300 = vmatpush1.msra.mxu0 0.0
      %1301 = vmatprep.subr.mxu0 0.0
      %1302 = vmatpush1.msra.mxu0 0.0
      %1303 = vmatprep.subr.mxu0 0.0
      %1304 = vmatpush1.msra.mxu0 0.0
      %1305 = vmatprep.subr.mxu0 0.0
      %1306 = vmatpush1.msra.mxu0 0.0
      %1307 = vmatprep.subr.mxu0 0.0
      %1308 = vmatpush1.msra.mxu0 0.0
      %1309 = vmatprep.subr.mxu0 0.0
      %1310 = vmatpush1.msra.mxu0 0.0
      %1311 = vmatprep.subr.mxu0 0.0
      %1312 = vmatpush1.msra.mxu0 0.0
      %1313 = vmatprep.subr.mxu0 0.0
      %1314 = vmatpush1.msra.mxu0 0.0
      %1315 = vmatprep.subr.mxu0 0.0
      %1316 = vmatpush1.msra.mxu0 0.0
      %1317 = vmatprep.subr.mxu0 0.0
      %1318 = vmatpush1.msra.mxu0 0.0
      %1319 = vmatprep.subr.mxu0 0.0
      %1320 = vmatpush1.msra.mxu0 0.0
      %1321 = vmatprep.subr.mxu0 0.0
      %1322 = vmatpush1.msra.mxu0 0.0
      %1323 = vmatprep.subr.mxu0 0.0
      %1324 = vmatpush1.msra.mxu0 0.0
      %1325 = vmatprep.subr.mxu0 0.0
      %1326 = vmatpush1.msra.mxu0 0.0
      %1327 = vmatprep.subr.mxu0 0.0
      %1328 = vmatpush1.msra.mxu0 0.0
      %1329 = vmatprep.subr.mxu0 0.0
      %1330 = vmatpush1.msra.mxu0 0.0
      %1331 = vmatprep.subr.mxu0 0.0
      %1332 = vmatpush1.msra.mxu0 0.0
      %1333 = vmatprep.subr.mxu0 0.0
      %1334 = vmatpush1.msra.mxu0 0.0
      %1335 = vmatprep.subr.mxu0 0.0
      %1336 = vmatpush1.msra.mxu0 0.0
      %1337 = vmatprep.subr.mxu0 0.0
      %1338 = vmatpush1.msra.mxu0 0.0
      %1339 = vmatprep.subr.mxu0 0.0
      %1340 = vmatpush1.msra.mxu0 0.0
      %1341 = vmatprep.subr.mxu0 0.0
      %1342 = vmatpush1.msra.mxu0 0.0
      %1343 = vmatprep.subr.mxu0 0.0
      %1344 = vmatpush1.msra.mxu0 0.0
      %1345 = vmatprep.mubr.f32.mxu0 0.0
      %1346 = vmatmul.mubr.f32.gmra.mrb[0].mxu0 %v1276
      %v1347 = vpop.f32.mrb[0].mxu0
      %v1348 = vadd.f32 0.0, %v1347
      %v1349 = vpop.f32.mrb[0].mxu0
      %1350 = vdwg.mxu0
      %v1351 = vadd.f32 %v1268, %v1348
      %v1352 = vld [vmem:[%s4] sm:$0x1]
      %v1354 = vlaneseq
      %v1355 = vshrl.u32 %v1354, 7
      %v1356 = vsub.s32 0, %v1355
      %v1357 = vrot.slane %v1352, %v1356
      %v1359 = vadd.f32 %v1351, %v1357
      %1360 = vst.msk [vmem:[%s222] sm:$0xff] %vm223, %v1359
      %p1361 = scmp.lt.s32.totalorder %s16, 1
      %s1362 = scalar_select %p1361, %s16, 1
      %s1363 = smul.addr %s1362, 8
      %s1364 = scalar_lea.vmem %s5, %s1363
      // Predicated region
      $region41: #{tpu_custom_call.1} parent=39 // pred_check
        %p1365 = pneg %p144
      $region42: #{tpu_custom_call.1} parent=39 // pred_check_branch
        %1367 = sbr.rel (%p1365) target = $region44
      $region43: #{tpu_custom_call.1} parent=39 // pred_region
        _
      $region44: #{tpu_custom_call.1} parent=39 // pred_fallthru
        _
    $region40: #{tpu_custom_call.1} parent=5 // pred_fallthru
      _
    %p1368 = scmp.le.s32.totalorder 2, %s11
    // Predicated region
    $region45: #{tpu_custom_call.1} parent=5 // pred_check
      %p1369 = pneg %p1368
    $region46: #{tpu_custom_call.1} parent=5 // pred_check_branch
      %1371 = sbr.rel (%p1369) target = $region48
    $region47: #{tpu_custom_call.1} parent=5 // pred_region
      %s1372 = ssub.s32 %s11, 2
      // Predicated region
      $region49: #{tpu_custom_call.1} parent=47 // pred_check
        %p1373 = pneg %p150
      $region50: #{tpu_custom_call.1} parent=47 // pred_check_branch
        %1375 = sbr.rel (%p1373) target = $region52
      $region51: #{tpu_custom_call.1} parent=47 // pred_region
        %p1376 = scmp.lt.s32.totalorder %s17, 1
        %s1377 = scalar_select %p1376, %s17, 1
        %s1378 = smul.addr %s1377, 8
        %s1379 = scalar_lea.vmem %s5, %s1378
      $region52: #{tpu_custom_call.1} parent=47 // pred_fallthru
        _
    $region48: #{tpu_custom_call.1} parent=5 // pred_fallthru
      _
  $region6: #{tpu_custom_call.1} parent=0 // loop_footer
    %s15 = sadd.s32 1, %s11
  $region7: #{tpu_custom_call.1} parent=0 // loop_footer_branch
    %10 = sbr.rel target = $region3
  $region8: #{tpu_custom_call.1} parent=0 // loop_exit
    _

</llo_original>
